<compile_context>
chip_gen: v7x
topology: tpu7x:2x2x1
jax: 0.10.0
libtpu: 0.0.40
codegen_flags: <defaults>
</compile_context>

<pallas_src>
import functools

import jax
import jax.numpy as jnp
from jax.experimental import pallas as pl
from jax.experimental.pallas import tpu as pltpu

EPS = float(jnp.finfo(jnp.float32).eps)   # torch.nn.RMSNorm(eps=None) in fp32

LANE = 128       # channel dims are padded to a multiple of this
SUBLANE = 16     # per-element padded time length is a multiple of this (bf16 packing)


def _round_up(n, m):
    return ((n + m - 1) // m) * m


def _residual_block_kernel(
    x_ref,               # (rows, kcin_p)      bf16 im2col of x (K taps packed on lanes)
    c1rw_ref, c1rb_ref,  # (kcin_p, 2*cout_p)  bf16, (1, 2*cout_p) f32   [conv1 | residual]
    c2w_ref, c2b_ref,    # (K*cout_p, cout_p)  bf16, (1, cout_p)   f32
    n1w_ref, n2w_ref,    # (1, cout_p) f32 RMSNorm gains
    sew1_ref, seb1_ref,  # (cout_p, cr_p), (1, cr_p)   f32
    sew2_ref, seb2_ref,  # (cr_p, cout_p), (1, cout_p) f32
    out_ref,             # (rows, cout_p) f32
    *, K, dilation, left, T, tp, bblk, cout_p, inv_c, inv_t):
    """One grid step = bblk batch elements fused into the matmul M dimension."""
    rows = bblk * tp

    # Valid-time mask, built in-kernel (no HBM constant): rows [left, left+T) of each
    # per-element tp slab hold real samples, the rest is halo / sublane padding.
    t_idx = jax.lax.broadcasted_iota(jnp.int32, (tp, 1), 0)
    tmask = ((t_idx >= left) & (t_idx < left + T)).astype(jnp.float32)      # (tp, 1)

    # conv1 + 1x1 residual conv fused into ONE MXU matmul: the residual weights live
    # in the upper cout_p output columns, on the center-tap rows of the im2col.
    y = jnp.dot(x_ref[...], c1rw_ref[...],
                preferred_element_type=jnp.float32) + c1rb_ref[...]
    h = y[:, :cout_p]
    residual = y[:, cout_p:]

    # RMSNorm over channels -> ReLU.
    h = h * jax.lax.rsqrt(jnp.sum(h * h, axis=-1, keepdims=True) * inv_c + EPS)
    h = jnp.maximum(h * n1w_ref[...], 0.0)
    # Re-zero halo rows: they are conv2's 'same' zero padding and must not leak into
    # neighbouring valid rows or into the SE pool.
    h = (h.reshape(bblk, tp, cout_p) * tmask).reshape(rows, cout_p)

    # conv2: K XLU-rolled views of the resident activation accumulated on the MXU
    # (no materialized im2col).  Rolled-in wrapped rows only ever land on halo output
    # rows, which are masked / discarded, so results are unchanged.
    h2 = None
    for k in range(K):
        shift = (left - k * dilation) % rows
        hk = pltpu.roll(h, shift, 0) if shift else h
        part = jnp.dot(hk.astype(jnp.bfloat16),
                       c2w_ref[k * cout_p:(k + 1) * cout_p, :],
                       preferred_element_type=jnp.float32)
        h2 = part if h2 is None else h2 + part
    h2 = h2 + c2b_ref[...]

    # RMSNorm over channels.
    h2 = h2 * jax.lax.rsqrt(jnp.sum(h2 * h2, axis=-1, keepdims=True) * inv_c + EPS)
    h2 = h2 * n2w_ref[...]

    # SEBlock1D: masked global average pool over time -> FC -> ReLU -> FC -> sigmoid,
    # gate broadcast back over time on the VPU (no broadcast matmul).
    h2_3 = h2.reshape(bblk, tp, cout_p)
    pooled = jnp.sum(h2_3 * tmask, axis=1) * inv_t                     # (bblk, cout_p)
    g = jnp.maximum(jnp.dot(pooled, sew1_ref[...],
                            preferred_element_type=jnp.float32) + seb1_ref[...], 0.0)
    g = jax.nn.sigmoid(jnp.dot(g, sew2_ref[...],
                               preferred_element_type=jnp.float32) + seb2_ref[...])

    # gate * h2 + residual, final ReLU.  Halo rows are zeroed so out_flat is clean.
    # Dropout(p=0.3) is identity at inference.
    # TODO(synk): act='aptx' (APTx) branch not implemented; act='relu' is used.
    out3 = jnp.maximum(h2_3 * g[:, None, :]
                       + residual.reshape(bblk, tp, cout_p), 0.0) * tmask
    out_ref[...] = out3.reshape(rows, cout_p).astype(out_ref.dtype)


def _vmem_budget_bytes():
    try:
        cap = int(pltpu.get_tpu_info().vmem_capacity_bytes)
    except Exception:
        cap = 64 * 1024 * 1024
    # ~48 MiB on v7x (64 MiB physical), ~96 MiB on v5e/v6e (128 MiB physical).
    return int(min(max((3 * cap) // 4, 32 * 1024 * 1024), 112 * 1024 * 1024))


def residual_block_1d(x_nct, params, *, kernel_size=3, dilation=1):
    """x_nct: (B, Cin, T) like the PyTorch module.  Returns (B, Cout, T)."""
    B, Cin, T = x_nct.shape
    K = kernel_size
    Cout = params["conv1_w"].shape[-1]
    Cr = params["se_w1"].shape[-1]

    left = dilation * (K - 1) // 2               # 'same' padding
    right = dilation * (K - 1) - left
    halo = left + right

    kcin_p = _round_up(K * Cin, LANE)            # conv1 taps packed densely on lanes
    cout_p = _round_up(Cout, LANE)
    cr_p = _round_up(Cr, LANE)
    tp = _round_up(T + halo, SUBLANE)            # per-element padded time length

    # ---- batch-block selection: VMEM-aware, and keep >=2 grid steps so both v7x
    # TensorCores get work and the input/output pipeline stays engaged.
    vmem_budget = _vmem_budget_bytes()

    def footprint(rows):
        in_blk = 2 * rows * kcin_p * 2                       # bf16 input, double-buffered
        out_blk = 2 * rows * cout_p * 4                      # f32 output, double-buffered
        consts = (kcin_p * 2 * cout_p * 2 + K * cout_p * cout_p * 2
                  + 2 * cout_p * cr_p * 4 + 10 * 8 * LANE * 4)   # single-buffered
        interm = (rows * 2 * cout_p * 4                      # fused conv1/residual out
                  + 5 * rows * cout_p * 4 + 2 * rows * cout_p * 2)
        return in_blk + out_blk + consts + interm

    min_steps = 2 if B >= 2 else 1
    bblk = 1
    for cand in range(B, 0, -1):
        if B % cand or B // cand < min_steps:
            continue
        if footprint(cand * tp) <= vmem_budget:
            bblk = cand
            break
    rows = bblk * tp
    # TODO(synk): no time-tiling grid axis yet; a single very long sequence still
    # becomes one large block (would need an SE partial-sum accumulator to tile T).

    f32, bf16 = jnp.float32, jnp.bfloat16

    # ---- glue: NCT -> per-element zero-haloed slab -> lane-packed im2col, bf16 ----
    x_btc = jnp.transpose(x_nct, (0, 2, 1))
    x_slab = jnp.pad(x_btc, ((0, 0), (left, tp - T - left), (0, 0)))    # (B, tp, Cin)
    x_ext = jnp.pad(x_slab, ((0, 0), (left, right), (0, 0)))            # (B, tp+halo, Cin)
    cols = [x_ext[:, k * dilation:k * dilation + tp, :] for k in range(K)]
    im2col = cols[0] if K == 1 else jnp.concatenate(cols, axis=-1)      # (B, tp, K*Cin)
    im2col = jnp.pad(im2col, ((0, 0), (0, 0), (0, kcin_p - K * Cin)))
    x_p = im2col.astype(bf16).reshape(B * tp, kcin_p)

    # ---- parameter packing (channel-padded, matmul weights in bf16) ----
    def pad2(a, r, c, dt):
        return jnp.pad(a, ((0, r - a.shape[0]), (0, c - a.shape[1]))).astype(dt)

    # conv1: (K, Cin, Cout) -> dense (K*Cin, Cout); 1x1 residual conv fused as cout_p
    # extra output columns whose rows sit on the center tap of the im2col.
    kc = (K - 1) // 2                                       # tap with zero time offset
    w1 = params["conv1_w"].reshape(K * Cin, Cout)
    rw_emb = jnp.zeros((K * Cin, Cout), f32).at[kc * Cin:(kc + 1) * Cin, :].set(
        params["res_w"])
    c1rw = jnp.concatenate([pad2(w1, kcin_p, cout_p, f32),
                            pad2(rw_emb, kcin_p, cout_p, f32)], axis=1).astype(bf16)
    c1rb = jnp.concatenate([pad2(params["conv1_b"], 1, cout_p, f32),
                            pad2(params["res_b"], 1, cout_p, f32)], axis=1)

    # conv2: per-tap channel padding so the kernel slices tap k at rows [k*cout_p, ...).
    w2 = jnp.pad(params["conv2_w"], ((0, 0), (0, cout_p - Cout), (0, cout_p - Cout)))
    c2w = w2.reshape(K * cout_p, cout_p).astype(bf16)

    consts = [
        c1rw, c1rb, c2w,
        pad2(params["conv2_b"], 1, cout_p, f32),
        pad2(params["norm1_w"], 1, cout_p, f32),
        pad2(params["norm2_w"], 1, cout_p, f32),
        pad2(params["se_w1"], cout_p, cr_p, f32),
        pad2(params["se_b1"], 1, cr_p, f32),
        pad2(params["se_w2"], cr_p, cout_p, f32),
        pad2(params["se_b2"], 1, cout_p, f32),
    ]

    # Grid-invariant inputs: full-array block, single-buffered (their block index
    # never changes, so a second pipeline buffer is pure VMEM waste).
    def const_spec(a):
        nd = a.ndim
        return pl.BlockSpec(a.shape, lambda b, _nd=nd: (0,) * _nd,
                            pipeline_mode=pl.Buffered(1))

    kern = functools.partial(
        _residual_block_kernel, K=K, dilation=dilation, left=left, T=T, tp=tp,
        bblk=bblk, cout_p=cout_p, inv_c=1.0 / Cout, inv_t=1.0 / T)

    in_specs = ([pl.BlockSpec((rows, kcin_p), lambda b: (b, 0))]
                + [const_spec(a) for a in consts])
    out_specs = pl.BlockSpec((rows, cout_p), lambda b: (b, 0))

    out_flat = pl.pallas_call(
        kern,
        out_shape=jax.ShapeDtypeStruct((B * tp, cout_p), jnp.float32),
        grid_spec=pltpu.PrefetchScalarGridSpec(
            num_scalar_prefetch=0,
            grid=(B // bblk,),
            in_specs=in_specs,
            out_specs=out_specs,
        ),
        compiler_params=pltpu.CompilerParams(
            dimension_semantics=("parallel",),          # batch blocks are independent
            vmem_limit_bytes=vmem_budget),
    )(x_p, *consts)

    # glue back: (B*tp, cout_p) -> (B, Cout, T)
    out = out_flat.reshape(B, tp, cout_p)[:, left:left + T, :Cout]
    return jnp.transpose(out, (0, 2, 1)).astype(x_nct.dtype)


def init_params(key, Cin, Cout, K, reduction=4):
    """Deterministic synthetic parameters (shapes follow the PyTorch module)."""
    Cr = max(Cout // reduction, 1)
    ks = jax.random.split(key, 5)

    def w(k, shape, fan_in):
        return jax.random.normal(k, shape, jnp.float32) / jnp.sqrt(float(fan_in))

    return dict(
        conv1_w=w(ks[0], (K, Cin, Cout), Cin * K),     # Conv1d weight as (K, Cin, Cout)
        conv1_b=jnp.full((1, Cout), 0.02, jnp.float32),
        conv2_w=w(ks[1], (K, Cout, Cout), Cout * K),
        conv2_b=jnp.full((1, Cout), -0.01, jnp.float32),
        norm1_w=jnp.ones((1, Cout), jnp.float32),      # TransposeRMSNorm gains
        norm2_w=jnp.full((1, Cout), 1.1, jnp.float32),
        se_w1=w(ks[2], (Cout, Cr), Cout),              # SEBlock1D (reduction=4)
        se_b1=jnp.zeros((1, Cr), jnp.float32),
        se_w2=w(ks[3], (Cr, Cout), Cr),
        se_b2=jnp.zeros((1, Cout), jnp.float32),
        res_w=w(ks[4], (Cin, Cout), Cin),              # 1x1 residual conv (in != out)
        res_b=jnp.zeros((1, Cout), jnp.float32),
    )


def reference(x_nct, params, kernel_size=3, dilation=1):
    """Pure-JAX reference mirroring the kernel's bf16-matmul / f32-accumulate math."""
    K = kernel_size
    left = dilation * (K - 1) // 2
    right = dilation * (K - 1) - left
    x = jnp.transpose(x_nct, (0, 2, 1))
    B, T, _ = x.shape
    xb = x.astype(jnp.bfloat16)

    def conv(a_bf16, w, b):
        wb = w.astype(jnp.bfloat16)
        ap = jnp.pad(a_bf16, ((0, 0), (left, right), (0, 0)))
        acc = sum(jnp.einsum("btc,cd->btd", ap[:, k * dilation:k * dilation + T, :],
                             wb[k], preferred_element_type=jnp.float32)
                  for k in range(K))
        return acc + b

    res = jnp.einsum("btc,cd->btd", xb, params["res_w"].astype(jnp.bfloat16),
                     preferred_element_type=jnp.float32) + params["res_b"]
    h = conv(xb, params["conv1_w"], params["conv1_b"])
    h = h * jax.lax.rsqrt(jnp.mean(h * h, -1, keepdims=True) + EPS) * params["norm1_w"]
    h = jnp.maximum(h, 0.0)
    h2 = conv(h.astype(jnp.bfloat16), params["conv2_w"], params["conv2_b"])
    h2 = h2 * jax.lax.rsqrt(jnp.mean(h2 * h2, -1, keepdims=True) + EPS) * params["norm2_w"]
    s = jnp.mean(h2, axis=1, keepdims=True)
    s = jnp.maximum(jnp.einsum("btc,cd->btd", s, params["se_w1"]) + params["se_b1"], 0.0)
    s = jax.nn.sigmoid(jnp.einsum("btc,cd->btd", s, params["se_w2"]) + params["se_b2"])
    out = jnp.maximum(h2 * s + res, 0.0)
    return jnp.transpose(out, (0, 2, 1))


if __name__ == "__main__":
    B, Cin, Cout, T, K = 2, 8, 16, 32, 3
    key = jax.random.PRNGKey(0)
    kx, kp = jax.random.split(key)
    x = jax.random.normal(kx, (B, Cin, T), jnp.float32)     # PyTorch-style NCT input
    params = init_params(kp, Cin, Cout, K)

    out = residual_block_1d(x, params, kernel_size=K, dilation=1)
    out = jax.block_until_ready(out)

    ref = reference(x, params, kernel_size=K, dilation=1)
    assert out.shape == (B, Cout, T)
    assert jnp.allclose(out, ref, atol=1e-3, rtol=1e-3), "mismatch vs JAX reference"
    print("KERNEL_OK")
</pallas_src>

<mosaic_0001>
module attributes {stable_mosaic.version = 11 : i64} {
  func.func @_residual_block_kernel(%arg0: i32, %arg1: memref<48x128xbf16, #tpu.memory_space<vmem>>, %arg2: memref<128x256xbf16, #tpu.memory_space<vmem>>, %arg3: memref<1x256xf32, #tpu.memory_space<vmem>>, %arg4: memref<384x128xbf16, #tpu.memory_space<vmem>>, %arg5: memref<1x128xf32, #tpu.memory_space<vmem>>, %arg6: memref<1x128xf32, #tpu.memory_space<vmem>>, %arg7: memref<1x128xf32, #tpu.memory_space<vmem>>, %arg8: memref<128x128xf32, #tpu.memory_space<vmem>>, %arg9: memref<1x128xf32, #tpu.memory_space<vmem>>, %arg10: memref<128x128xf32, #tpu.memory_space<vmem>>, %arg11: memref<1x128xf32, #tpu.memory_space<vmem>>, %arg12: memref<48x128xf32, #tpu.memory_space<vmem>>) attributes {dimension_semantics = [#tpu.dimension_semantics<parallel>], iteration_bounds = array<i64: 2>, scalar_prefetch = 0 : i64, scratch_operands = 0 : i64, tpu.core_type = #tpu.core_type<tc>, window_params = [{transform_indices = @transform_0, window_bounds = array<i64: 48, 128>}, {pipeline_mode = #tpu.pipeline_mode<synchronous>, transform_indices = @transform_1, window_bounds = array<i64: 128, 256>}, {pipeline_mode = #tpu.pipeline_mode<synchronous>, transform_indices = @transform_2, window_bounds = array<i64: 1, 256>}, {pipeline_mode = #tpu.pipeline_mode<synchronous>, transform_indices = @transform_3, window_bounds = array<i64: 384, 128>}, {pipeline_mode = #tpu.pipeline_mode<synchronous>, transform_indices = @transform_4, window_bounds = array<i64: 1, 128>}, {pipeline_mode = #tpu.pipeline_mode<synchronous>, transform_indices = @transform_5, window_bounds = array<i64: 1, 128>}, {pipeline_mode = #tpu.pipeline_mode<synchronous>, transform_indices = @transform_6, window_bounds = array<i64: 1, 128>}, {pipeline_mode = #tpu.pipeline_mode<synchronous>, transform_indices = @transform_7, window_bounds = array<i64: 128, 128>}, {pipeline_mode = #tpu.pipeline_mode<synchronous>, transform_indices = @transform_8, window_bounds = array<i64: 1, 128>}, {pipeline_mode = #tpu.pipeline_mode<synchronous>, transform_indices = @transform_9, window_bounds = array<i64: 128, 128>}, {pipeline_mode = #tpu.pipeline_mode<synchronous>, transform_indices = @transform_10, window_bounds = array<i64: 1, 128>}, {transform_indices = @transform_11, window_bounds = array<i64: 48, 128>}]} {
    %0 = tpu.iota {dimensions = array<i32: 0>} : vector<48x1xi32>
    %c1_i32 = arith.constant 1 : i32
    %1 = vector.broadcast %c1_i32 : i32 to vector<48x1xi32>
    %2 = arith.cmpi sge, %0, %1 : vector<48x1xi32>
    %c33_i32 = arith.constant 33 : i32
    %3 = vector.broadcast %c33_i32 : i32 to vector<48x1xi32>
    %4 = arith.cmpi slt, %0, %3 : vector<48x1xi32>
    %5 = arith.andi %2, %4 : vector<48x1xi1>
    %6 = arith.extui %5 : vector<48x1xi1> to vector<48x1xi32>
    %7 = arith.sitofp %6 : vector<48x1xi32> to vector<48x1xf32>
    %c0 = arith.constant 0 : index
    %c0_0 = arith.constant 0 : index
    %8 = vector.load %arg1[%c0, %c0_0] : memref<48x128xbf16, #tpu.memory_space<vmem>>, vector<48x128xbf16>
    %c0_1 = arith.constant 0 : index
    %c0_2 = arith.constant 0 : index
    %9 = vector.load %arg2[%c0_1, %c0_2] : memref<128x256xbf16, #tpu.memory_space<vmem>>, vector<128x256xbf16>
    %cst = arith.constant dense<0.000000e+00> : vector<48x256xf32>
    %10 = tpu.matmul %8, %9, %cst {dimension_numbers = #tpu.dot_dimension_numbers<[1], [0], [0], [1], [0, 0, 1, 1], [], []>} : vector<48x128xbf16>, vector<128x256xbf16>, vector<48x256xf32> -> vector<48x256xf32>
    %c0_3 = arith.constant 0 : index
    %c0_4 = arith.constant 0 : index
    %11 = vector.load %arg3[%c0_3, %c0_4] : memref<1x256xf32, #tpu.memory_space<vmem>>, vector<1x256xf32>
    %12 = vector.broadcast %11 : vector<1x256xf32> to vector<48x256xf32>
    %13 = arith.addf %10, %12 : vector<48x256xf32>
    %14 = vector.extract_strided_slice %13 {offsets = [0, 0], sizes = [48, 128], strides = [1, 1]} : vector<48x256xf32> to vector<48x128xf32>
    %15 = vector.extract_strided_slice %13 {offsets = [0, 128], sizes = [48, 128], strides = [1, 1]} : vector<48x256xf32> to vector<48x128xf32>
    %16 = arith.mulf %14, %14 : vector<48x128xf32>
    %cst_5 = arith.constant dense<0.000000e+00> : vector<48xf32>
    %17 = vector.multi_reduction <add>, %16, %cst_5 [1] : vector<48x128xf32> to vector<48xf32>
    %18 = vector.shape_cast %17 : vector<48xf32> to vector<48x1xf32>
    %cst_6 = arith.constant 6.250000e-02 : f32
    %19 = vector.broadcast %cst_6 : f32 to vector<48x1xf32>
    %20 = arith.mulf %18, %19 : vector<48x1xf32>
    %cst_7 = arith.constant 1.1920929E-7 : f32
    %21 = vector.broadcast %cst_7 : f32 to vector<48x1xf32>
    %22 = arith.addf %20, %21 : vector<48x1xf32>
    %23 = math.rsqrt %22 : vector<48x1xf32>
    %24 = vector.broadcast %23 : vector<48x1xf32> to vector<48x128xf32>
    %25 = arith.mulf %14, %24 : vector<48x128xf32>
    %c0_8 = arith.constant 0 : index
    %c0_9 = arith.constant 0 : index
    %26 = vector.load %arg6[%c0_8, %c0_9] : memref<1x128xf32, #tpu.memory_space<vmem>>, vector<1x128xf32>
    %27 = vector.broadcast %26 : vector<1x128xf32> to vector<48x128xf32>
    %28 = arith.mulf %25, %27 : vector<48x128xf32>
    %cst_10 = arith.constant 0.000000e+00 : f32
    %29 = vector.broadcast %cst_10 : f32 to vector<48x128xf32>
    %30 = arith.maximumf %28, %29 : vector<48x128xf32>
    %31 = vector.shape_cast %30 : vector<48x128xf32> to vector<1x48x128xf32>
    %32 = vector.shape_cast %7 : vector<48x1xf32> to vector<1x48x1xf32>
    %33 = vector.broadcast %32 : vector<1x48x1xf32> to vector<1x48x128xf32>
    %34 = arith.mulf %31, %33 : vector<1x48x128xf32>
    %35 = vector.shape_cast %34 : vector<1x48x128xf32> to vector<48x128xf32>
    %c1_i32_11 = arith.constant 1 : i32
    %36 = tpu.dynamic_rotate %35 by %c1_i32_11 dim 0 : vector<48x128xf32>, i32 -> vector<48x128xf32>
    %37 = arith.truncf %36 : vector<48x128xf32> to vector<48x128xbf16>
    %c0_12 = arith.constant 0 : index
    %c0_13 = arith.constant 0 : index
    %38 = vector.load %arg4[%c0_12, %c0_13] : memref<384x128xbf16, #tpu.memory_space<vmem>>, vector<128x128xbf16>
    %cst_14 = arith.constant dense<0.000000e+00> : vector<48x128xf32>
    %39 = tpu.matmul %37, %38, %cst_14 {dimension_numbers = #tpu.dot_dimension_numbers<[1], [0], [0], [1], [0, 0, 1, 1], [], []>} : vector<48x128xbf16>, vector<128x128xbf16>, vector<48x128xf32> -> vector<48x128xf32>
    %40 = arith.truncf %35 : vector<48x128xf32> to vector<48x128xbf16>
    %c128 = arith.constant 128 : index
    %c0_15 = arith.constant 0 : index
    %41 = vector.load %arg4[%c128, %c0_15] : memref<384x128xbf16, #tpu.memory_space<vmem>>, vector<128x128xbf16>
    %cst_16 = arith.constant dense<0.000000e+00> : vector<48x128xf32>
    %42 = tpu.matmul %40, %41, %cst_16 {dimension_numbers = #tpu.dot_dimension_numbers<[1], [0], [0], [1], [0, 0, 1, 1], [], []>} : vector<48x128xbf16>, vector<128x128xbf16>, vector<48x128xf32> -> vector<48x128xf32>
    %43 = arith.addf %39, %42 : vector<48x128xf32>
    %c47_i32 = arith.constant 47 : i32
    %44 = tpu.dynamic_rotate %35 by %c47_i32 dim 0 : vector<48x128xf32>, i32 -> vector<48x128xf32>
    %45 = arith.truncf %44 : vector<48x128xf32> to vector<48x128xbf16>
    %c256 = arith.constant 256 : index
    %c0_17 = arith.constant 0 : index
    %46 = vector.load %arg4[%c256, %c0_17] : memref<384x128xbf16, #tpu.memory_space<vmem>>, vector<128x128xbf16>
    %cst_18 = arith.constant dense<0.000000e+00> : vector<48x128xf32>
    %47 = tpu.matmul %45, %46, %cst_18 {dimension_numbers = #tpu.dot_dimension_numbers<[1], [0], [0], [1], [0, 0, 1, 1], [], []>} : vector<48x128xbf16>, vector<128x128xbf16>, vector<48x128xf32> -> vector<48x128xf32>
    %48 = arith.addf %43, %47 : vector<48x128xf32>
    %c0_19 = arith.constant 0 : index
    %c0_20 = arith.constant 0 : index
    %49 = vector.load %arg5[%c0_19, %c0_20] : memref<1x128xf32, #tpu.memory_space<vmem>>, vector<1x128xf32>
    %50 = vector.broadcast %49 : vector<1x128xf32> to vector<48x128xf32>
    %51 = arith.addf %48, %50 : vector<48x128xf32>
    %52 = arith.mulf %51, %51 : vector<48x128xf32>
    %cst_21 = arith.constant dense<0.000000e+00> : vector<48xf32>
    %53 = vector.multi_reduction <add>, %52, %cst_21 [1] : vector<48x128xf32> to vector<48xf32>
    %54 = vector.shape_cast %53 : vector<48xf32> to vector<48x1xf32>
    %cst_22 = arith.constant 6.250000e-02 : f32
    %55 = vector.broadcast %cst_22 : f32 to vector<48x1xf32>
    %56 = arith.mulf %54, %55 : vector<48x1xf32>
    %cst_23 = arith.constant 1.1920929E-7 : f32
    %57 = vector.broadcast %cst_23 : f32 to vector<48x1xf32>
    %58 = arith.addf %56, %57 : vector<48x1xf32>
    %59 = math.rsqrt %58 : vector<48x1xf32>
    %60 = vector.broadcast %59 : vector<48x1xf32> to vector<48x128xf32>
    %61 = arith.mulf %51, %60 : vector<48x128xf32>
    %c0_24 = arith.constant 0 : index
    %c0_25 = arith.constant 0 : index
    %62 = vector.load %arg7[%c0_24, %c0_25] : memref<1x128xf32, #tpu.memory_space<vmem>>, vector<1x128xf32>
    %63 = vector.broadcast %62 : vector<1x128xf32> to vector<48x128xf32>
    %64 = arith.mulf %61, %63 : vector<48x128xf32>
    %65 = vector.shape_cast %64 : vector<48x128xf32> to vector<1x48x128xf32>
    %66 = vector.shape_cast %7 : vector<48x1xf32> to vector<1x48x1xf32>
    %67 = vector.broadcast %66 : vector<1x48x1xf32> to vector<1x48x128xf32>
    %68 = arith.mulf %65, %67 : vector<1x48x128xf32>
    %cst_26 = arith.constant dense<0.000000e+00> : vector<1x128xf32>
    %69 = vector.multi_reduction <add>, %68, %cst_26 [1] : vector<1x48x128xf32> to vector<1x128xf32>
    %cst_27 = arith.constant 3.125000e-02 : f32
    %70 = vector.broadcast %cst_27 : f32 to vector<1x128xf32>
    %71 = arith.mulf %69, %70 : vector<1x128xf32>
    %c0_28 = arith.constant 0 : index
    %c0_29 = arith.constant 0 : index
    %72 = vector.load %arg8[%c0_28, %c0_29] : memref<128x128xf32, #tpu.memory_space<vmem>>, vector<128x128xf32>
    %cst_30 = arith.constant dense<0.000000e+00> : vector<1x128xf32>
    %73 = tpu.matmul %71, %72, %cst_30 {dimension_numbers = #tpu.dot_dimension_numbers<[1], [0], [0], [1], [0, 0, 1, 1], [], []>} : vector<1x128xf32>, vector<128x128xf32>, vector<1x128xf32> -> vector<1x128xf32>
    %c0_31 = arith.constant 0 : index
    %c0_32 = arith.constant 0 : index
    %74 = vector.load %arg9[%c0_31, %c0_32] : memref<1x128xf32, #tpu.memory_space<vmem>>, vector<1x128xf32>
    %75 = arith.addf %73, %74 : vector<1x128xf32>
    %cst_33 = arith.constant 0.000000e+00 : f32
    %76 = vector.broadcast %cst_33 : f32 to vector<1x128xf32>
    %77 = arith.maximumf %75, %76 : vector<1x128xf32>
    %c0_34 = arith.constant 0 : index
    %c0_35 = arith.constant 0 : index
    %78 = vector.load %arg10[%c0_34, %c0_35] : memref<128x128xf32, #tpu.memory_space<vmem>>, vector<128x128xf32>
    %cst_36 = arith.constant dense<0.000000e+00> : vector<1x128xf32>
    %79 = tpu.matmul %77, %78, %cst_36 {dimension_numbers = #tpu.dot_dimension_numbers<[1], [0], [0], [1], [0, 0, 1, 1], [], []>} : vector<1x128xf32>, vector<128x128xf32>, vector<1x128xf32> -> vector<1x128xf32>
    %c0_37 = arith.constant 0 : index
    %c0_38 = arith.constant 0 : index
    %80 = vector.load %arg11[%c0_37, %c0_38] : memref<1x128xf32, #tpu.memory_space<vmem>>, vector<1x128xf32>
    %81 = arith.addf %79, %80 : vector<1x128xf32>
    %82 = arith.negf %81 : vector<1x128xf32>
    %83 = math.exp %82 : vector<1x128xf32>
    %cst_39 = arith.constant 1.000000e+00 : f32
    %84 = vector.broadcast %cst_39 : f32 to vector<1x128xf32>
    %85 = arith.addf %84, %83 : vector<1x128xf32>
    %86 = arith.divf %84, %85 : vector<1x128xf32>
    %87 = vector.shape_cast %86 : vector<1x128xf32> to vector<1x1x128xf32>
    %88 = vector.broadcast %87 : vector<1x1x128xf32> to vector<1x48x128xf32>
    %89 = arith.mulf %65, %88 : vector<1x48x128xf32>
    %90 = vector.shape_cast %15 : vector<48x128xf32> to vector<1x48x128xf32>
    %91 = arith.addf %89, %90 : vector<1x48x128xf32>
    %cst_40 = arith.constant 0.000000e+00 : f32
    %92 = vector.broadcast %cst_40 : f32 to vector<1x48x128xf32>
    %93 = arith.maximumf %91, %92 : vector<1x48x128xf32>
    %94 = vector.shape_cast %7 : vector<48x1xf32> to vector<1x48x1xf32>
    %95 = vector.broadcast %94 : vector<1x48x1xf32> to vector<1x48x128xf32>
    %96 = arith.mulf %93, %95 : vector<1x48x128xf32>
    %97 = vector.shape_cast %96 : vector<1x48x128xf32> to vector<48x128xf32>
    %c0_41 = arith.constant 0 : index
    %c0_42 = arith.constant 0 : index
    %98 = vector.load %arg12[%c0_41, %c0_42] : memref<48x128xf32, #tpu.memory_space<vmem>>, vector<48x128xf32>
    tpu.vector_store %arg12[%c0_41, %c0_42], %97 {strides = array<i32>} : memref<48x128xf32, #tpu.memory_space<vmem>>, vector<48x128xf32>,
    return
  }
  func.func @transform_0(%arg0: i32) -> (i32, i32) {
    %c0_i32 = arith.constant 0 : i32
    %c0_i32_0 = arith.constant 0 : i32
    return %arg0, %c0_i32 : i32, i32
  }
  func.func @transform_1(%arg0: i32) -> (i32, i32) {
    %c0_i32 = arith.constant 0 : i32
    %c0_i32_0 = arith.constant 0 : i32
    %c0_i32_1 = arith.constant 0 : i32
    return %c0_i32, %c0_i32_0 : i32, i32
  }
  func.func @transform_2(%arg0: i32) -> (i32, i32) {
    %c0_i32 = arith.constant 0 : i32
    %c0_i32_0 = arith.constant 0 : i32
    %c0_i32_1 = arith.constant 0 : i32
    return %c0_i32, %c0_i32_0 : i32, i32
  }
  func.func @transform_3(%arg0: i32) -> (i32, i32) {
    %c0_i32 = arith.constant 0 : i32
    %c0_i32_0 = arith.constant 0 : i32
    %c0_i32_1 = arith.constant 0 : i32
    return %c0_i32, %c0_i32_0 : i32, i32
  }
  func.func @transform_4(%arg0: i32) -> (i32, i32) {
    %c0_i32 = arith.constant 0 : i32
    %c0_i32_0 = arith.constant 0 : i32
    %c0_i32_1 = arith.constant 0 : i32
    return %c0_i32, %c0_i32_0 : i32, i32
  }
  func.func @transform_5(%arg0: i32) -> (i32, i32) {
    %c0_i32 = arith.constant 0 : i32
    %c0_i32_0 = arith.constant 0 : i32
    %c0_i32_1 = arith.constant 0 : i32
    return %c0_i32, %c0_i32_0 : i32, i32
  }
  func.func @transform_6(%arg0: i32) -> (i32, i32) {
    %c0_i32 = arith.constant 0 : i32
    %c0_i32_0 = arith.constant 0 : i32
    %c0_i32_1 = arith.constant 0 : i32
    return %c0_i32, %c0_i32_0 : i32, i32
  }
  func.func @transform_7(%arg0: i32) -> (i32, i32) {
    %c0_i32 = arith.constant 0 : i32
    %c0_i32_0 = arith.constant 0 : i32
    %c0_i32_1 = arith.constant 0 : i32
    return %c0_i32, %c0_i32_0 : i32, i32
  }
  func.func @transform_8(%arg0: i32) -> (i32, i32) {
    %c0_i32 = arith.constant 0 : i32
    %c0_i32_0 = arith.constant 0 : i32
    %c0_i32_1 = arith.constant 0 : i32
    return %c0_i32, %c0_i32_0 : i32, i32
  }
  func.func @transform_9(%arg0: i32) -> (i32, i32) {
    %c0_i32 = arith.constant 0 : i32
    %c0_i32_0 = arith.constant 0 : i32
    %c0_i32_1 = arith.constant 0 : i32
    return %c0_i32, %c0_i32_0 : i32, i32
  }
  func.func @transform_10(%arg0: i32) -> (i32, i32) {
    %c0_i32 = arith.constant 0 : i32
    %c0_i32_0 = arith.constant 0 : i32
    %c0_i32_1 = arith.constant 0 : i32
    return %c0_i32, %c0_i32_0 : i32, i32
  }
  func.func @transform_11(%arg0: i32) -> (i32, i32) {
    %c0_i32 = arith.constant 0 : i32
    %c0_i32_0 = arith.constant 0 : i32
    return %arg0, %c0_i32 : i32, i32
  }
}

</mosaic_0001>

<llo_original>
// kernel: tpu_custom_call.1
$region0: #{tpu_custom_call.1}
  #allocation0 [shape = 'u32[]', space=smem, size = 0x4, offset = 0x4, fixed_abs, tag = 'smem constant byte address 0x4 - core index']
  #allocation1 [shape = 'u32[144,128]{1,0:T(1,128)}', space=vmem, size = 0x12000, scoped, tag = 'internal scratch']
  %s0 = inlined_call_operand.hbm [shape: bf16[96,128], index: 0, kind: input, shape index: {}]
  %s1 = inlined_call_operand.hbm [shape: bf16[128,256], index: 1, kind: input, shape index: {}]
  %s2 = inlined_call_operand.vmem [shape: f32[1,256], index: 2, kind: input, shape index: {}]
  %s3 = inlined_call_operand.hbm [shape: bf16[384,128], index: 3, kind: input, shape index: {}]
  %s4 = inlined_call_operand.vmem [shape: f32[1,128], index: 4, kind: input, shape index: {}]
  %s5 = inlined_call_operand.vmem [shape: f32[1,128], index: 5, kind: input, shape index: {}]
  %s6 = inlined_call_operand.vmem [shape: f32[1,128], index: 6, kind: input, shape index: {}]
  %s7 = inlined_call_operand.hbm [shape: f32[128,128], index: 7, kind: input, shape index: {}]
  %s8 = inlined_call_operand.vmem [shape: f32[1,128], index: 8, kind: input, shape index: {}]
  %s9 = inlined_call_operand.hbm [shape: f32[128,128], index: 9, kind: input, shape index: {}]
  %s10 = inlined_call_operand.vmem [shape: f32[1,128], index: 10, kind: input, shape index: {}]
  %s11 = inlined_call_operand.hbm [shape: f32[96,128], index: 11, kind: output, shape index: {}]
  %s12 = sld [smem:[#allocation0]]
  $region97: #{tpu_custom_call.1} parent=0
    _
  %s14 = ssub.s32 1, %s12
  %s15 = scalar_select 0, %s14, %s12
  $region1: #{tpu_custom_call.1} parent=0
    #allocation2 [shape = 'u8[24576]{0}', space=vmem, size = 0x6000, scoped, tag = 'input window, operand 0']
    #allocation3 [shape = 's32[2]{0}', space=sflag, size = 0x8, scoped, tag = 'scoped memory for tpu_custom_call.1']
    #allocation4 [shape = 's32[2]{0}', space=sflag, size = 0x8, scoped, tag = 'scoped memory for tpu_custom_call.1']
    #allocation5 [shape = 'u8[65536]{0}', space=vmem, size = 0x10000, scoped, tag = 'input window, operand 1, single buffered']
    #allocation6 [shape = 's32[1]{0}', space=sflag, size = 0x4, scoped, tag = 'scoped memory for tpu_custom_call.1']
    #allocation7 [shape = 'u8[98304]{0}', space=vmem, size = 0x18000, scoped, tag = 'input window, operand 3, single buffered']
    #allocation8 [shape = 'u8[65536]{0}', space=vmem, size = 0x10000, scoped, tag = 'input window, operand 7, single buffered']
    #allocation9 [shape = 's32[1]{0}', space=sflag, size = 0x4, scoped, tag = 'scoped memory for tpu_custom_call.1']
    #allocation10 [shape = 'u8[65536]{0}', space=vmem, size = 0x10000, scoped, tag = 'input window, operand 9, single buffered']
    #allocation11 [shape = 'u8[49152]{0}', space=vmem, size = 0xc000, scoped, tag = 'output window, operand 0']
    %16 = vsyncpa [#allocation3], 0
    %s17 = scalar_lea.sflag [#allocation3], 1
    %18 = vsyncpa %s17, 0
    %19 = vsyncpa [#allocation6], 0
    %20 = vsyncpa [#allocation9], 0
    %21 = vsyncpa [#allocation4], 0
    %s22 = scalar_lea.sflag [#allocation4], 1
    %23 = vsyncpa %s22, 0
    loop: start=0, step=1, limit=4
    $region2: #{tpu_custom_call.1} parent=1 // loop_pre_header
      _
    $region3: #{tpu_custom_call.1} parent=1 // loop_header
      %s25 = sphi 0, %s29
      %p26 = scmp.ge.s32.totalorder %s25, 4
      %s35 = sphi 0, %s37
      %s38 = sphi 0, %s35
      %s39 = sphi 0, %s38
      %s55 = sphi 0, %s39
      %s59 = sphi 0, %s59
      %s61 = sphi 0, %s59
      %s62 = sphi 0, %s61
      %s76 = sphi 0, %s62
      %s80 = sphi 0, %s80
      %s82 = sphi 0, %s80
      %s83 = sphi 0, %s82
      %s97 = sphi 0, %s83
      %s101 = sphi 0, %s101
      %s103 = sphi 0, %s101
      %s104 = sphi 0, %s103
      %s118 = sphi 0, %s104
      %s122 = sphi 0, %s122
      %s124 = sphi 0, %s122
      %s125 = sphi 0, %s124
      %s139 = sphi 0, %s125
      %s143 = sphi 0, %s143
      %s145 = sphi 0, %s143
      %s146 = sphi 0, %s145
      %s160 = sphi 0, %s146
      %s164 = sphi 0, %s164
      %s166 = sphi 0, %s164
      %s167 = sphi 0, %s166
      %s181 = sphi 0, %s167
      %s185 = sphi 0, %s185
      %s187 = sphi 0, %s185
      %s188 = sphi 0, %s187
      %s202 = sphi 0, %s188
      %s206 = sphi 0, %s206
      %s208 = sphi 0, %s206
      %s209 = sphi 0, %s208
      %s223 = sphi 0, %s209
      %s227 = sphi 0, %s227
      %s229 = sphi 0, %s227
      %s230 = sphi 0, %s229
      %s244 = sphi 0, %s230
      %s248 = sphi 0, %s248
      %s250 = sphi 0, %s248
      %s251 = sphi 0, %s250
      %s265 = sphi 0, %s251
      %s271 = sphi 0, %s273
      %s274 = sphi 0, %s271
      %s275 = sphi 0, %s274
      %s291 = sphi 0, %s275
    $region4: #{tpu_custom_call.1} parent=1 // loop_header_branch
      %28 = sbr.rel (%p26) target = $region8
    $region5: #{tpu_custom_call.1} parent=1 // loop_body
      %s30 = ssub.s32 %s25, 1
      %s31 = ssub.s32 %s25, 2
      %s32 = sadd.s32 %s25, 1
      %s33 = ssub.s32 %s25, %s32
      %p34 = scmp.eq.s32.totalorder %s33, 0
      %s36 = sadd.s32 %s35, 1
      %s37 = scalar_select %p34, %s35, %s36
      %p40 = pneg %p34
      %p41 = scmp.eq.s32.totalorder %s25, 1
      %p42 = por %p40, %p41
      %p43 = scmp.ne.s32.totalorder %s35, %s38
      %p44 = scmp.eq.s32.totalorder %s25, 0
      %p45 = por %p43, %p44
      %p46 = scmp.ne.s32.totalorder %s35, %s38
      %p47 = scmp.eq.s32.totalorder %s30, 1
      %p48 = por %p46, %p47
      %p49 = scmp.ne.s32.totalorder %s38, %s39
      %p50 = scmp.eq.s32.totalorder %s30, 0
      %p51 = por %p49, %p50
      %p52 = scmp.ne.s32.totalorder %s38, %s39
      %p53 = scmp.eq.s32.totalorder %s31, 1
      %p54 = por %p52, %p53
      %p56 = scmp.ne.s32.totalorder %s39, %s55
      %p57 = scmp.eq.s32.totalorder %s31, 0
      %p58 = por %p56, %p57
      %s60 = sadd.s32 %s59, 1
      %p63 = scmp.eq.s32.totalorder %s25, 1
      %p64 = scmp.ne.s32.totalorder %s59, %s61
      %p65 = scmp.eq.s32.totalorder %s25, 0
      %p66 = por %p64, %p65
      %p67 = scmp.ne.s32.totalorder %s59, %s61
      %p68 = scmp.eq.s32.totalorder %s30, 1
      %p69 = por %p67, %p68
      %p70 = scmp.ne.s32.totalorder %s61, %s62
      %p71 = scmp.eq.s32.totalorder %s30, 0
      %p72 = por %p70, %p71
      %p73 = scmp.ne.s32.totalorder %s61, %s62
      %p74 = scmp.eq.s32.totalorder %s31, 1
      %p75 = por %p73, %p74
      %p77 = scmp.ne.s32.totalorder %s62, %s76
      %p78 = scmp.eq.s32.totalorder %s31, 0
      %p79 = por %p77, %p78
      %s81 = sadd.s32 %s80, 1
      %p84 = scmp.eq.s32.totalorder %s25, 1
      %p85 = scmp.ne.s32.totalorder %s80, %s82
      %p86 = scmp.eq.s32.totalorder %s25, 0
      %p87 = por %p85, %p86
      %p88 = scmp.ne.s32.totalorder %s80, %s82
      %p89 = scmp.eq.s32.totalorder %s30, 1
      %p90 = por %p88, %p89
      %p91 = scmp.ne.s32.totalorder %s82, %s83
      %p92 = scmp.eq.s32.totalorder %s30, 0
      %p93 = por %p91, %p92
      %p94 = scmp.ne.s32.totalorder %s82, %s83
      %p95 = scmp.eq.s32.totalorder %s31, 1
      %p96 = por %p94, %p95
      %p98 = scmp.ne.s32.totalorder %s83, %s97
      %p99 = scmp.eq.s32.totalorder %s31, 0
      %p100 = por %p98, %p99
      %s102 = sadd.s32 %s101, 1
      %p105 = scmp.eq.s32.totalorder %s25, 1
      %p106 = scmp.ne.s32.totalorder %s101, %s103
      %p107 = scmp.eq.s32.totalorder %s25, 0
      %p108 = por %p106, %p107
      %p109 = scmp.ne.s32.totalorder %s101, %s103
      %p110 = scmp.eq.s32.totalorder %s30, 1
      %p111 = por %p109, %p110
      %p112 = scmp.ne.s32.totalorder %s103, %s104
      %p113 = scmp.eq.s32.totalorder %s30, 0
      %p114 = por %p112, %p113
      %p115 = scmp.ne.s32.totalorder %s103, %s104
      %p116 = scmp.eq.s32.totalorder %s31, 1
      %p117 = por %p115, %p116
      %p119 = scmp.ne.s32.totalorder %s104, %s118
      %p120 = scmp.eq.s32.totalorder %s31, 0
      %p121 = por %p119, %p120
      %s123 = sadd.s32 %s122, 1
      %p126 = scmp.eq.s32.totalorder %s25, 1
      %p127 = scmp.ne.s32.totalorder %s122, %s124
      %p128 = scmp.eq.s32.totalorder %s25, 0
      %p129 = por %p127, %p128
      %p130 = scmp.ne.s32.totalorder %s122, %s124
      %p131 = scmp.eq.s32.totalorder %s30, 1
      %p132 = por %p130, %p131
      %p133 = scmp.ne.s32.totalorder %s124, %s125
      %p134 = scmp.eq.s32.totalorder %s30, 0
      %p135 = por %p133, %p134
      %p136 = scmp.ne.s32.totalorder %s124, %s125
      %p137 = scmp.eq.s32.totalorder %s31, 1
      %p138 = por %p136, %p137
      %p140 = scmp.ne.s32.totalorder %s125, %s139
      %p141 = scmp.eq.s32.totalorder %s31, 0
      %p142 = por %p140, %p141
      %s144 = sadd.s32 %s143, 1
      %p147 = scmp.eq.s32.totalorder %s25, 1
      %p148 = scmp.ne.s32.totalorder %s143, %s145
      %p149 = scmp.eq.s32.totalorder %s25, 0
      %p150 = por %p148, %p149
      %p151 = scmp.ne.s32.totalorder %s143, %s145
      %p152 = scmp.eq.s32.totalorder %s30, 1
      %p153 = por %p151, %p152
      %p154 = scmp.ne.s32.totalorder %s145, %s146
      %p155 = scmp.eq.s32.totalorder %s30, 0
      %p156 = por %p154, %p155
      %p157 = scmp.ne.s32.totalorder %s145, %s146
      %p158 = scmp.eq.s32.totalorder %s31, 1
      %p159 = por %p157, %p158
      %p161 = scmp.ne.s32.totalorder %s146, %s160
      %p162 = scmp.eq.s32.totalorder %s31, 0
      %p163 = por %p161, %p162
      %s165 = sadd.s32 %s164, 1
      %p168 = scmp.eq.s32.totalorder %s25, 1
      %p169 = scmp.ne.s32.totalorder %s164, %s166
      %p170 = scmp.eq.s32.totalorder %s25, 0
      %p171 = por %p169, %p170
      %p172 = scmp.ne.s32.totalorder %s164, %s166
      %p173 = scmp.eq.s32.totalorder %s30, 1
      %p174 = por %p172, %p173
      %p175 = scmp.ne.s32.totalorder %s166, %s167
      %p176 = scmp.eq.s32.totalorder %s30, 0
      %p177 = por %p175, %p176
      %p178 = scmp.ne.s32.totalorder %s166, %s167
      %p179 = scmp.eq.s32.totalorder %s31, 1
      %p180 = por %p178, %p179
      %p182 = scmp.ne.s32.totalorder %s167, %s181
      %p183 = scmp.eq.s32.totalorder %s31, 0
      %p184 = por %p182, %p183
      %s186 = sadd.s32 %s185, 1
      %p189 = scmp.eq.s32.totalorder %s25, 1
      %p190 = scmp.ne.s32.totalorder %s185, %s187
      %p191 = scmp.eq.s32.totalorder %s25, 0
      %p192 = por %p190, %p191
      %p193 = scmp.ne.s32.totalorder %s185, %s187
      %p194 = scmp.eq.s32.totalorder %s30, 1
      %p195 = por %p193, %p194
      %p196 = scmp.ne.s32.totalorder %s187, %s188
      %p197 = scmp.eq.s32.totalorder %s30, 0
      %p198 = por %p196, %p197
      %p199 = scmp.ne.s32.totalorder %s187, %s188
      %p200 = scmp.eq.s32.totalorder %s31, 1
      %p201 = por %p199, %p200
      %p203 = scmp.ne.s32.totalorder %s188, %s202
      %p204 = scmp.eq.s32.totalorder %s31, 0
      %p205 = por %p203, %p204
      %s207 = sadd.s32 %s206, 1
      %p210 = scmp.eq.s32.totalorder %s25, 1
      %p211 = scmp.ne.s32.totalorder %s206, %s208
      %p212 = scmp.eq.s32.totalorder %s25, 0
      %p213 = por %p211, %p212
      %p214 = scmp.ne.s32.totalorder %s206, %s208
      %p215 = scmp.eq.s32.totalorder %s30, 1
      %p216 = por %p214, %p215
      %p217 = scmp.ne.s32.totalorder %s208, %s209
      %p218 = scmp.eq.s32.totalorder %s30, 0
      %p219 = por %p217, %p218
      %p220 = scmp.ne.s32.totalorder %s208, %s209
      %p221 = scmp.eq.s32.totalorder %s31, 1
      %p222 = por %p220, %p221
      %p224 = scmp.ne.s32.totalorder %s209, %s223
      %p225 = scmp.eq.s32.totalorder %s31, 0
      %p226 = por %p224, %p225
      %s228 = sadd.s32 %s227, 1
      %p231 = scmp.eq.s32.totalorder %s25, 1
      %p232 = scmp.ne.s32.totalorder %s227, %s229
      %p233 = scmp.eq.s32.totalorder %s25, 0
      %p234 = por %p232, %p233
      %p235 = scmp.ne.s32.totalorder %s227, %s229
      %p236 = scmp.eq.s32.totalorder %s30, 1
      %p237 = por %p235, %p236
      %p238 = scmp.ne.s32.totalorder %s229, %s230
      %p239 = scmp.eq.s32.totalorder %s30, 0
      %p240 = por %p238, %p239
      %p241 = scmp.ne.s32.totalorder %s229, %s230
      %p242 = scmp.eq.s32.totalorder %s31, 1
      %p243 = por %p241, %p242
      %p245 = scmp.ne.s32.totalorder %s230, %s244
      %p246 = scmp.eq.s32.totalorder %s31, 0
      %p247 = por %p245, %p246
      %s249 = sadd.s32 %s248, 1
      %p252 = scmp.eq.s32.totalorder %s25, 1
      %p253 = scmp.ne.s32.totalorder %s248, %s250
      %p254 = scmp.eq.s32.totalorder %s25, 0
      %p255 = por %p253, %p254
      %p256 = scmp.ne.s32.totalorder %s248, %s250
      %p257 = scmp.eq.s32.totalorder %s30, 1
      %p258 = por %p256, %p257
      %p259 = scmp.ne.s32.totalorder %s250, %s251
      %p260 = scmp.eq.s32.totalorder %s30, 0
      %p261 = por %p259, %p260
      %p262 = scmp.ne.s32.totalorder %s250, %s251
      %p263 = scmp.eq.s32.totalorder %s31, 1
      %p264 = por %p262, %p263
      %p266 = scmp.ne.s32.totalorder %s251, %s265
      %p267 = scmp.eq.s32.totalorder %s31, 0
      %p268 = por %p266, %p267
      %s269 = ssub.s32 %s25, %s32
      %p270 = scmp.eq.s32.totalorder %s269, 0
      %s272 = sadd.s32 %s271, 1
      %s273 = scalar_select %p270, %s271, %s272
      %p276 = pneg %p270
      %p277 = scmp.eq.s32.totalorder %s25, 1
      %p278 = por %p276, %p277
      %p279 = scmp.ne.s32.totalorder %s271, %s274
      %p280 = scmp.eq.s32.totalorder %s25, 0
      %p281 = por %p279, %p280
      %p282 = scmp.ne.s32.totalorder %s271, %s274
      %p283 = scmp.eq.s32.totalorder %s30, 1
      %p284 = por %p282, %p283
      %p285 = scmp.ne.s32.totalorder %s274, %s275
      %p286 = scmp.eq.s32.totalorder %s30, 0
      %p287 = por %p285, %p286
      %p288 = scmp.ne.s32.totalorder %s274, %s275
      %p289 = scmp.eq.s32.totalorder %s31, 1
      %p290 = por %p288, %p289
      %p292 = scmp.ne.s32.totalorder %s275, %s291
      %p293 = scmp.eq.s32.totalorder %s31, 0
      %p294 = por %p292, %p293
      %p295 = scmp.le.s32.totalorder 1, %s25
      %p296 = scmp.lt.s32.totalorder %s25, 3
      %p297 = pnand %p295, %p296
      %p298 = pneg %p297
      // Predicated region
      $region9: #{tpu_custom_call.1} parent=5 // pred_check
        _
      $region10: #{tpu_custom_call.1} parent=5 // pred_check_branch
        %300 = sbr.rel (%p297) target = $region12
      $region11: #{tpu_custom_call.1} parent=5 // pred_region
        %s301 = ssub.s32 %s25, 1
        // Predicated region
        $region13: #{tpu_custom_call.1} parent=11 // pred_check
          %p302 = pneg %p72
        $region14: #{tpu_custom_call.1} parent=11 // pred_check_branch
          %304 = sbr.rel (%p302) target = $region16
        $region15: #{tpu_custom_call.1} parent=11 // pred_region
          %s306 = ssub.s32 2048, 2048
          %307 = vsyncadd [#allocation6], %s306
          %s308 = sshll.u32 [#allocation5], 4
          %s309 = int_to_ptr.vmem [resolvable:$true] %s308
          %314 = dma.hbm_to_vmem [thread:$0]  %s1, 2048, %s309, [#allocation6], 128, 128, 8
        $region16: #{tpu_custom_call.1} parent=11 // pred_fallthru
          _
        // Predicated region
        $region17: #{tpu_custom_call.1} parent=11 // pred_check
          %p315 = pneg %p93
        $region18: #{tpu_custom_call.1} parent=11 // pred_check_branch
          %317 = sbr.rel (%p315) target = $region20
        $region19: #{tpu_custom_call.1} parent=11 // pred_region
          _
        $region20: #{tpu_custom_call.1} parent=11 // pred_fallthru
          _
        // Predicated region
        $region21: #{tpu_custom_call.1} parent=11 // pred_check
          %p318 = pneg %p114
        $region22: #{tpu_custom_call.1} parent=11 // pred_check_branch
          %320 = sbr.rel (%p318) target = $region24
        $region23: #{tpu_custom_call.1} parent=11 // pred_region
          %s322 = ssub.s32 3072, 3072
          %323 = vsyncadd [#allocation6], %s322
          %s324 = sshll.u32 [#allocation7], 4
          %s325 = int_to_ptr.vmem [resolvable:$true] %s324
          %330 = dma.hbm_to_vmem [thread:$0]  %s3, 3072, %s325, [#allocation6], 64, 64, 4
        $region24: #{tpu_custom_call.1} parent=11 // pred_fallthru
          _
        // Predicated region
        $region25: #{tpu_custom_call.1} parent=11 // pred_check
          %p331 = pneg %p135
        $region26: #{tpu_custom_call.1} parent=11 // pred_check_branch
          %333 = sbr.rel (%p331) target = $region28
        $region27: #{tpu_custom_call.1} parent=11 // pred_region
          _
        $region28: #{tpu_custom_call.1} parent=11 // pred_fallthru
          _
        // Predicated region
        $region29: #{tpu_custom_call.1} parent=11 // pred_check
          %p334 = pneg %p156
        $region30: #{tpu_custom_call.1} parent=11 // pred_check_branch
          %336 = sbr.rel (%p334) target = $region32
        $region31: #{tpu_custom_call.1} parent=11 // pred_region
          _
        $region32: #{tpu_custom_call.1} parent=11 // pred_fallthru
          _
        // Predicated region
        $region33: #{tpu_custom_call.1} parent=11 // pred_check
          %p337 = pneg %p177
        $region34: #{tpu_custom_call.1} parent=11 // pred_check_branch
          %339 = sbr.rel (%p337) target = $region36
        $region35: #{tpu_custom_call.1} parent=11 // pred_region
          _
        $region36: #{tpu_custom_call.1} parent=11 // pred_fallthru
          _
        // Predicated region
        $region37: #{tpu_custom_call.1} parent=11 // pred_check
          %p340 = pneg %p198
        $region38: #{tpu_custom_call.1} parent=11 // pred_check_branch
          %342 = sbr.rel (%p340) target = $region40
        $region39: #{tpu_custom_call.1} parent=11 // pred_region
          %s344 = ssub.s32 2048, 2048
          %345 = vsyncadd [#allocation9], %s344
          %s346 = sshll.u32 [#allocation8], 4
          %s347 = int_to_ptr.vmem [resolvable:$true] %s346
          %352 = dma.hbm_to_vmem [thread:$0]  %s7, 2048, %s347, [#allocation9], 128, 128, 8
        $region40: #{tpu_custom_call.1} parent=11 // pred_fallthru
          _
        // Predicated region
        $region41: #{tpu_custom_call.1} parent=11 // pred_check
          %p353 = pneg %p219
        $region42: #{tpu_custom_call.1} parent=11 // pred_check_branch
          %355 = sbr.rel (%p353) target = $region44
        $region43: #{tpu_custom_call.1} parent=11 // pred_region
          _
        $region44: #{tpu_custom_call.1} parent=11 // pred_fallthru
          _
        // Predicated region
        $region45: #{tpu_custom_call.1} parent=11 // pred_check
          %p356 = pneg %p240
        $region46: #{tpu_custom_call.1} parent=11 // pred_check_branch
          %358 = sbr.rel (%p356) target = $region48
        $region47: #{tpu_custom_call.1} parent=11 // pred_region
          %s360 = ssub.s32 2048, 2048
          %361 = vsyncadd [#allocation9], %s360
          %s362 = sshll.u32 [#allocation10], 4
          %s363 = int_to_ptr.vmem [resolvable:$true] %s362
          %368 = dma.hbm_to_vmem [thread:$0]  %s9, 2048, %s363, [#allocation9], 128, 128, 8
        $region48: #{tpu_custom_call.1} parent=11 // pred_fallthru
          _
        // Predicated region
        $region49: #{tpu_custom_call.1} parent=11 // pred_check
          %p369 = pneg %p261
        $region50: #{tpu_custom_call.1} parent=11 // pred_check_branch
          %371 = sbr.rel (%p369) target = $region52
        $region51: #{tpu_custom_call.1} parent=11 // pred_region
          _
        $region52: #{tpu_custom_call.1} parent=11 // pred_fallthru
          _
      $region12: #{tpu_custom_call.1} parent=5 // pred_fallthru
        _
      %p372 = scmp.lt.s32.totalorder %s25, 2
      // Predicated region
      $region53: #{tpu_custom_call.1} parent=5 // pred_check
        %p373 = pneg %p372
      $region54: #{tpu_custom_call.1} parent=5 // pred_check_branch
        %375 = sbr.rel (%p373) target = $region56
      $region55: #{tpu_custom_call.1} parent=5 // pred_region
        // Predicated region
        $region57: #{tpu_custom_call.1} parent=55 // pred_check
          %p376 = pneg %p45
        $region58: #{tpu_custom_call.1} parent=55 // pred_check_branch
          %378 = sbr.rel (%p376) target = $region60
        $region59: #{tpu_custom_call.1} parent=55 // pred_region
          %s379 = sand.u32 %s35, 1
          %s380 = scalar_lea.sflag [#allocation3], %s379
          %s381 = sand.u32 %s35, 1
          %s382 = smul.addr %s381, 24
          %s383 = scalar_lea.vmem [#allocation2], %s382
          %s384 = smul.u32 6, %s25
          %s386 = ssub.s32 384, 384
          %387 = vsyncadd %s380, %s386
          %s388 = smul.addr %s384, 64
          %s389 = scalar_lea.hbm %s0, %s388
          %s390 = sshll.u32 %s383, 4
          %s391 = int_to_ptr.vmem [resolvable:$true] %s390
          %396 = dma.hbm_to_vmem [thread:$0]  %s389, 384, %s391, %s380, 64, 64, 4
        $region60: #{tpu_custom_call.1} parent=55 // pred_fallthru
          _
      $region56: #{tpu_custom_call.1} parent=5 // pred_fallthru
        _
      %p397 = scmp.le.s32.totalorder 1, %s25
      %p398 = scmp.lt.s32.totalorder %s25, 3
      %p399 = pnand %p397, %p398
      %p400 = pneg %p399
      // Predicated region
      $region61: #{tpu_custom_call.1} parent=5 // pred_check
        _
      $region62: #{tpu_custom_call.1} parent=5 // pred_check_branch
        %402 = sbr.rel (%p399) target = $region64
      $region63: #{tpu_custom_call.1} parent=5 // pred_region
        %s403 = ssub.s32 %s25, 1
        %s404 = sand.u32 %s38, 1
        %s405 = scalar_lea.sflag [#allocation3], %s404
        %s406 = sand.u32 %s38, 1
        %s407 = smul.addr %s406, 24
        %s408 = scalar_lea.vmem [#allocation2], %s407
        // Predicated region
        $region65: #{tpu_custom_call.1} parent=63 // pred_check
          %p409 = pneg %p51
        $region66: #{tpu_custom_call.1} parent=63 // pred_check_branch
          %411 = sbr.rel (%p409) target = $region68
        $region67: #{tpu_custom_call.1} parent=63 // pred_region
          %412 = dma.done %s405, 384
        $region68: #{tpu_custom_call.1} parent=63 // pred_fallthru
          _
        // Predicated region
        $region69: #{tpu_custom_call.1} parent=63 // pred_check
          %p413 = pneg %p72
        $region70: #{tpu_custom_call.1} parent=63 // pred_check_branch
          %415 = sbr.rel (%p413) target = $region72
        $region71: #{tpu_custom_call.1} parent=63 // pred_region
          %416 = dma.done [#allocation6], 2048
        $region72: #{tpu_custom_call.1} parent=63 // pred_fallthru
          _
        // Predicated region
        $region73: #{tpu_custom_call.1} parent=63 // pred_check
          %p417 = pneg %p114
        $region74: #{tpu_custom_call.1} parent=63 // pred_check_branch
          %419 = sbr.rel (%p417) target = $region76
        $region75: #{tpu_custom_call.1} parent=63 // pred_region
          %420 = dma.done [#allocation6], 3072
        $region76: #{tpu_custom_call.1} parent=63 // pred_fallthru
          _
        // Predicated region
        $region77: #{tpu_custom_call.1} parent=63 // pred_check
          %p421 = pneg %p198
        $region78: #{tpu_custom_call.1} parent=63 // pred_check_branch
          %423 = sbr.rel (%p421) target = $region80
        $region79: #{tpu_custom_call.1} parent=63 // pred_region
          %424 = dma.done [#allocation9], 2048
        $region80: #{tpu_custom_call.1} parent=63 // pred_fallthru
          _
        // Predicated region
        $region81: #{tpu_custom_call.1} parent=63 // pred_check
          %p425 = pneg %p240
        $region82: #{tpu_custom_call.1} parent=63 // pred_check_branch
          %427 = sbr.rel (%p425) target = $region84
        $region83: #{tpu_custom_call.1} parent=63 // pred_region
          %428 = dma.done [#allocation9], 2048
        $region84: #{tpu_custom_call.1} parent=63 // pred_fallthru
          _
        %s429 = sand.u32 %s38, 1
        %s430 = scalar_lea.sflag [#allocation3], %s429
        %s431 = sand.u32 %s38, 1
        %s432 = smul.addr %s431, 24
        %s433 = scalar_lea.vmem [#allocation2], %s432
        %p434 = pneg %p51
        %p435 = pneg %p48
        %p436 = pneg %p72
        %p437 = pneg %p69
        %p438 = pneg %p93
        %p439 = pneg %p90
        %p440 = pneg %p114
        %p441 = pneg %p111
        %p442 = pneg %p135
        %p443 = pneg %p132
        %p444 = pneg %p156
        %p445 = pneg %p153
        %p446 = pneg %p177
        %p447 = pneg %p174
        %p448 = pneg %p198
        %p449 = pneg %p195
        %p450 = pneg %p219
        %p451 = pneg %p216
        %p452 = pneg %p240
        %p453 = pneg %p237
        %p454 = pneg %p261
        %p455 = pneg %p258
        %p456 = pneg %p287
        %p457 = pneg %p284
        %s458 = sand.u32 %s274, 1
        %s459 = scalar_lea.sflag [#allocation4], %s458
        %s460 = sand.u32 %s274, 1
        %s461 = smul.addr %s460, 48
        %s462 = scalar_lea.vmem [#allocation11], %s461
        %s463 = smul.u32 6, %s30
        %s464 = smul.u32 6, %s30
        %v466 = vlaneseq
        %v467 = vshrl.u32 %v466, 7
        %v468 = vadd.s32 %v467, 8
        %v469 = vadd.s32 %v467, 16
        %v470 = vadd.s32 %v467, 24
        %v471 = vadd.s32 %v467, 32
        %v472 = vadd.s32 %v467, 40
        %vm473 = vcmp.ge.s32.totalorder %v467, 1
        %vm474 = vcmp.ge.s32.totalorder %v468, 1
        %vm475 = vcmp.ge.s32.totalorder %v469, 1
        %vm476 = vcmp.ge.s32.totalorder %v470, 1
        %vm477 = vcmp.ge.s32.totalorder %v471, 1
        %vm478 = vcmp.ge.s32.totalorder %v472, 1
        %vm479 = vcmp.lt.s32.totalorder %v467, 33
        %vm480 = vcmp.lt.s32.totalorder %v468, 33
        %vm481 = vcmp.lt.s32.totalorder %v469, 33
        %vm482 = vcmp.lt.s32.totalorder %v470, 33
        %vm483 = vcmp.lt.s32.totalorder %v471, 33
        %vm484 = vcmp.lt.s32.totalorder %v472, 33
        %vm485 = vmand %vm473, %vm479
        %vm486 = vmand %vm474, %vm480
        %vm487 = vmand %vm475, %vm481
        %vm488 = vmand %vm476, %vm482
        %vm489 = vmand %vm477, %vm483
        %vm490 = vmand %vm478, %vm484
        %v491 = vsel %vm485, 1, 0
        %v492 = vsel %vm486, 1, 0
        %v493 = vsel %vm487, 1, 0
        %v494 = vsel %vm488, 1, 0
        %v495 = vsel %vm489, 1, 0
        %v496 = vsel %vm490, 1, 0
        %v497 = vcvt.s32.f32 %v491
        %v498 = vcvt.s32.f32 %v492
        %v499 = vcvt.s32.f32 %v493
        %v500 = vcvt.s32.f32 %v494
        %v501 = vcvt.s32.f32 %v495
        %v502 = vcvt.s32.f32 %v496
        %v503 = vld [vmem:[%s408] sm:$0xf]
        %v504 = vld [vmem:[%s408 + $0x4] sm:$0xf]
        %v505 = vld [vmem:[%s408 + $0x8] sm:$0xf]
        %v506 = vld [vmem:[%s408 + $0xc] sm:$0xf]
        %v507 = vld [vmem:[%s408 + $0x10] sm:$0xf]
        %v508 = vld [vmem:[%s408 + $0x14] sm:$0xf]
        %v509 = vld [vmem:[#allocation5] sm:$0xff]
        %v510 = vld [vmem:[#allocation5 + $0x8] sm:$0xff]
        %v511 = vld [vmem:[#allocation5 + $0x10] sm:$0xff]
        %v512 = vld [vmem:[#allocation5 + $0x18] sm:$0xff]
        %v513 = vld [vmem:[#allocation5 + $0x20] sm:$0xff]
        %v514 = vld [vmem:[#allocation5 + $0x28] sm:$0xff]
        %v515 = vld [vmem:[#allocation5 + $0x30] sm:$0xff]
        %v516 = vld [vmem:[#allocation5 + $0x38] sm:$0xff]
        %v517 = vld [vmem:[#allocation5 + $0x40] sm:$0xff]
        %v518 = vld [vmem:[#allocation5 + $0x48] sm:$0xff]
        %v519 = vld [vmem:[#allocation5 + $0x50] sm:$0xff]
        %v520 = vld [vmem:[#allocation5 + $0x58] sm:$0xff]
        %v521 = vld [vmem:[#allocation5 + $0x60] sm:$0xff]
        %v522 = vld [vmem:[#allocation5 + $0x68] sm:$0xff]
        %v523 = vld [vmem:[#allocation5 + $0x70] sm:$0xff]
        %v524 = vld [vmem:[#allocation5 + $0x78] sm:$0xff]
        %v525 = vld [vmem:[%s2] sm:$0x3]
        %v527 = vlaneseq
        %v528 = vshrl.u32 %v527, 7
        %v529 = vsub.s32 0, %v528
        %v530 = vrot.slane %v525, %v529
        %v531 = vlaneseq
        %v532 = vshrl.u32 %v531, 7
        %v533 = vsub.s32 1, %v532
        %v534 = vrot.slane %v525, %v533
        %v543 = vunpack.c.l.b16 %v503
        %v544 = vunpack.c.l.b16 %v504
        %v545 = vunpack.c.l.b16 %v505
        %v546 = vunpack.c.l.b16 %v506
        %v547 = vunpack.c.l.b16 %v507
        %v548 = vunpack.c.l.b16 %v508
        %v549 = vpack.c.b16 %v544, %v543
        %v550 = vpack.c.b16 %v546, %v545
        %v551 = vpack.c.b16 %v548, %v547
        %v571 = vunpack.c.l.b16 %v509
        %v572 = vunpack.c.h.b16 %v509
        %v573 = vunpack.c.l.b16 %v510
        %v574 = vunpack.c.h.b16 %v510
        %v575 = vunpack.c.l.b16 %v511
        %v576 = vunpack.c.h.b16 %v511
        %v577 = vunpack.c.l.b16 %v512
        %v578 = vunpack.c.h.b16 %v512
        %v579 = vunpack.c.l.b16 %v513
        %v580 = vunpack.c.h.b16 %v513
        %v581 = vunpack.c.l.b16 %v514
        %v582 = vunpack.c.h.b16 %v514
        %v583 = vunpack.c.l.b16 %v515
        %v584 = vunpack.c.h.b16 %v515
        %v585 = vunpack.c.l.b16 %v516
        %v586 = vunpack.c.h.b16 %v516
        %v587 = vunpack.c.l.b16 %v517
        %v588 = vunpack.c.h.b16 %v517
        %v589 = vunpack.c.l.b16 %v518
        %v590 = vunpack.c.h.b16 %v518
        %v591 = vunpack.c.l.b16 %v519
        %v592 = vunpack.c.h.b16 %v519
        %v593 = vunpack.c.l.b16 %v520
        %v594 = vunpack.c.h.b16 %v520
        %v595 = vunpack.c.l.b16 %v521
        %v596 = vunpack.c.h.b16 %v521
        %v597 = vunpack.c.l.b16 %v522
        %v598 = vunpack.c.h.b16 %v522
        %v599 = vunpack.c.l.b16 %v523
        %v600 = vunpack.c.h.b16 %v523
        %v601 = vunpack.c.l.b16 %v524
        %v602 = vunpack.c.h.b16 %v524
        %v603 = vpack.c.b16 %v573, %v571
        %v604 = vpack.c.b16 %v574, %v572
        %v605 = vpack.c.b16 %v577, %v575
        %v606 = vpack.c.b16 %v578, %v576
        %v607 = vpack.c.b16 %v581, %v579
        %v608 = vpack.c.b16 %v582, %v580
        %v609 = vpack.c.b16 %v585, %v583
        %v610 = vpack.c.b16 %v586, %v584
        %v611 = vpack.c.b16 %v589, %v587
        %v612 = vpack.c.b16 %v590, %v588
        %v613 = vpack.c.b16 %v593, %v591
        %v614 = vpack.c.b16 %v594, %v592
        %v615 = vpack.c.b16 %v597, %v595
        %v616 = vpack.c.b16 %v598, %v596
        %v617 = vpack.c.b16 %v601, %v599
        %v618 = vpack.c.b16 %v602, %v600
        %635 = vmatprep.subr.bf16.mxu0 %v604
        %636 = vmatpush1.bf16.msra.mxu0 %v603
        %637 = vmatprep.subr.bf16.mxu0 %v606
        %638 = vmatpush1.bf16.msra.mxu0 %v605
        %639 = vmatprep.subr.bf16.mxu0 %v608
        %640 = vmatpush1.bf16.msra.mxu0 %v607
        %641 = vmatprep.subr.bf16.mxu0 %v610
        %642 = vmatpush1.bf16.msra.mxu0 %v609
        %643 = vmatprep.subr.bf16.mxu0 %v612
        %644 = vmatpush1.bf16.msra.mxu0 %v611
        %645 = vmatprep.subr.bf16.mxu0 %v614
        %646 = vmatpush1.bf16.msra.mxu0 %v613
        %647 = vmatprep.subr.bf16.mxu0 %v616
        %648 = vmatpush1.bf16.msra.mxu0 %v615
        %649 = vmatprep.subr.bf16.mxu0 %v618
        %650 = vmatpush1.bf16.msra.mxu0 %v617
        %651 = vmatprep.subr.bf16.mxu0 0
        %652 = vmatpush1.bf16.msra.mxu0 0
        %653 = vmatprep.subr.bf16.mxu0 0
        %654 = vmatpush1.bf16.msra.mxu0 0
        %655 = vmatprep.subr.bf16.mxu0 0
        %656 = vmatpush1.bf16.msra.mxu0 0
        %657 = vmatprep.subr.bf16.mxu0 0
        %658 = vmatpush1.bf16.msra.mxu0 0
        %659 = vmatprep.subr.bf16.mxu0 0
        %660 = vmatpush1.bf16.msra.mxu0 0
        %661 = vmatprep.subr.bf16.mxu0 0
        %662 = vmatpush1.bf16.msra.mxu0 0
        %663 = vmatprep.subr.bf16.mxu0 0
        %664 = vmatpush1.bf16.msra.mxu0 0
        %665 = vmatprep.subr.bf16.mxu0 0
        %666 = vmatpush1.bf16.msra.mxu0 0
        %667 = vmatprep.mubr.bf16.mxu0 0
        %668 = vmatmul.mubr.bf16.gmra.mrb[0].mxu0 %v549
        %v669 = vpop.f32.mrb[0].mxu0
        %v670 = vadd.f32 %v530, %v669
        %v671 = vpop.f32.mrb[0].mxu0
        %v672 = vadd.f32 %v534, %v671
        %v673 = vpop.f32.mrb[0].mxu0
        %v674 = vadd.f32 %v530, %v673
        %v675 = vpop.f32.mrb[0].mxu0
        %v676 = vadd.f32 %v534, %v675
        %677 = vmatprep.mubr.bf16.mxu0 0
        %678 = vmatmul.mubr.bf16.gmra.mrb[0].mxu0 %v550
        %v679 = vpop.f32.mrb[0].mxu0
        %v680 = vadd.f32 %v530, %v679
        %v681 = vpop.f32.mrb[0].mxu0
        %v682 = vadd.f32 %v534, %v681
        %v683 = vpop.f32.mrb[0].mxu0
        %v684 = vadd.f32 %v530, %v683
        %v685 = vpop.f32.mrb[0].mxu0
        %v686 = vadd.f32 %v534, %v685
        %687 = vmatprep.mubr.bf16.mxu0 0
        %688 = vmatmul.mubr.bf16.gmra.mrb[0].mxu0 %v551
        %v689 = vpop.f32.mrb[0].mxu0
        %v690 = vadd.f32 %v530, %v689
        %v691 = vpop.f32.mrb[0].mxu0
        %v692 = vadd.f32 %v534, %v691
        %v693 = vpop.f32.mrb[0].mxu0
        %v694 = vadd.f32 %v530, %v693
        %v695 = vpop.f32.mrb[0].mxu0
        %v696 = vadd.f32 %v534, %v695
        %697 = vdwg.mxu0
        %v698 = vmul.f32 %v670, %v670
        %v699 = vmul.f32 %v674, %v674
        %v700 = vmul.f32 %v680, %v680
        %v701 = vmul.f32 %v684, %v684
        %v702 = vmul.f32 %v690, %v690
        %v703 = vmul.f32 %v694, %v694
        %704 = vadd.xlane.f32.xlu0 %v698
        %v705 = vpop.xlane.xlu0 %704
        %706 = vadd.xlane.f32.xlu0 %v699
        %v707 = vpop.xlane.xlu0 %706
        %708 = vadd.xlane.f32.xlu0 %v700
        %v709 = vpop.xlane.xlu0 %708
        %710 = vadd.xlane.f32.xlu0 %v701
        %v711 = vpop.xlane.xlu0 %710
        %712 = vadd.xlane.f32.xlu0 %v702
        %v713 = vpop.xlane.xlu0 %712
        %714 = vadd.xlane.f32.xlu0 %v703
        %v715 = vpop.xlane.xlu0 %714
        %v716 = vmul.f32 %v705, 0.0625
        %v717 = vmul.f32 %v707, 0.0625
        %v718 = vmul.f32 %v709, 0.0625
        %v719 = vmul.f32 %v711, 0.0625
        %v720 = vmul.f32 %v713, 0.0625
        %v721 = vmul.f32 %v715, 0.0625
        %v722 = vadd.f32 %v716, 1.1920929e-07
        %v723 = vadd.f32 %v717, 1.1920929e-07
        %v724 = vadd.f32 %v718, 1.1920929e-07
        %v725 = vadd.f32 %v719, 1.1920929e-07
        %v726 = vadd.f32 %v720, 1.1920929e-07
        %v727 = vadd.f32 %v721, 1.1920929e-07
        %v728 = vrsqrt.pop %v722
        %v729 = vrsqrt.pop %v723
        %v730 = vrsqrt.pop %v724
        %v731 = vrsqrt.pop %v725
        %v732 = vrsqrt.pop %v726
        %v733 = vrsqrt.pop %v727
        %v734 = vmul.f32 %v670, %v728
        %v735 = vmul.f32 %v674, %v729
        %v736 = vmul.f32 %v680, %v730
        %v737 = vmul.f32 %v684, %v731
        %v738 = vmul.f32 %v690, %v732
        %v739 = vmul.f32 %v694, %v733
        %v740 = vld [vmem:[%s5] sm:$0x1]
        %v742 = vlaneseq
        %v743 = vshrl.u32 %v742, 7
        %v744 = vsub.s32 0, %v743
        %v745 = vrot.slane %v740, %v744
        %v747 = vmul.f32 %v734, %v745
        %v748 = vmul.f32 %v735, %v745
        %v749 = vmul.f32 %v736, %v745
        %v750 = vmul.f32 %v737, %v745
        %v751 = vmul.f32 %v738, %v745
        %v752 = vmul.f32 %v739, %v745
        %v753 = vmax.f32 %v747, 0.0
        %v754 = vmax.f32 %v748, 0.0
        %v755 = vmax.f32 %v749, 0.0
        %v756 = vmax.f32 %v750, 0.0
        %v757 = vmax.f32 %v751, 0.0
        %v758 = vmax.f32 %v752, 0.0
        %v759 = vmul.f32 %v753, %v497
        %v760 = vmul.f32 %v754, %v498
        %v761 = vmul.f32 %v755, %v499
        %v762 = vmul.f32 %v756, %v500
        %v763 = vmul.f32 %v757, %v501
        %v764 = vmul.f32 %v758, %v502
        %v765 = vrot.slane %v759, 7
        %v766 = vrot.slane %v760, 7
        %v767 = vrot.slane %v761, 7
        %v768 = vrot.slane %v762, 7
        %v769 = vrot.slane %v763, 7
        %v770 = vrot.slane %v764, 7
        %vm771 = vcmp.lt.s32.totalorder %v467, 1
        %v772 = vsel %vm771, %v769, %v770
        %v773 = vsel %vm771, %v768, %v769
        %v774 = vsel %vm771, %v767, %v768
        %v775 = vsel %vm771, %v766, %v767
        %v776 = vsel %vm771, %v765, %v766
        %v777 = vsel %vm771, %v770, %v765
        %v778 = vpack.c.bf16 %v776, %v777
        %v779 = vpack.c.bf16 %v774, %v775
        %v780 = vpack.c.bf16 %v772, %v773
        %v781 = vld [vmem:[#allocation7] sm:$0xf]
        %v782 = vld [vmem:[#allocation7 + $0x4] sm:$0xf]
        %v783 = vld [vmem:[#allocation7 + $0x8] sm:$0xf]
        %v784 = vld [vmem:[#allocation7 + $0xc] sm:$0xf]
        %v785 = vld [vmem:[#allocation7 + $0x10] sm:$0xf]
        %v786 = vld [vmem:[#allocation7 + $0x14] sm:$0xf]
        %v787 = vld [vmem:[#allocation7 + $0x18] sm:$0xf]
        %v788 = vld [vmem:[#allocation7 + $0x1c] sm:$0xf]
        %v789 = vld [vmem:[#allocation7 + $0x20] sm:$0xf]
        %v790 = vld [vmem:[#allocation7 + $0x24] sm:$0xf]
        %v791 = vld [vmem:[#allocation7 + $0x28] sm:$0xf]
        %v792 = vld [vmem:[#allocation7 + $0x2c] sm:$0xf]
        %v793 = vld [vmem:[#allocation7 + $0x30] sm:$0xf]
        %v794 = vld [vmem:[#allocation7 + $0x34] sm:$0xf]
        %v795 = vld [vmem:[#allocation7 + $0x38] sm:$0xf]
        %v796 = vld [vmem:[#allocation7 + $0x3c] sm:$0xf]
        %v797 = vpack.c.bf16 %v760, %v759
        %v798 = vpack.c.bf16 %v762, %v761
        %v799 = vpack.c.bf16 %v764, %v763
        %v800 = vld [vmem:[#allocation7 + $0x40] sm:$0xf]
        %v801 = vld [vmem:[#allocation7 + $0x44] sm:$0xf]
        %v802 = vld [vmem:[#allocation7 + $0x48] sm:$0xf]
        %v803 = vld [vmem:[#allocation7 + $0x4c] sm:$0xf]
        %v804 = vld [vmem:[#allocation7 + $0x50] sm:$0xf]
        %v805 = vld [vmem:[#allocation7 + $0x54] sm:$0xf]
        %v806 = vld [vmem:[#allocation7 + $0x58] sm:$0xf]
        %v807 = vld [vmem:[#allocation7 + $0x5c] sm:$0xf]
        %v808 = vld [vmem:[#allocation7 + $0x60] sm:$0xf]
        %v809 = vld [vmem:[#allocation7 + $0x64] sm:$0xf]
        %v810 = vld [vmem:[#allocation7 + $0x68] sm:$0xf]
        %v811 = vld [vmem:[#allocation7 + $0x6c] sm:$0xf]
        %v812 = vld [vmem:[#allocation7 + $0x70] sm:$0xf]
        %v813 = vld [vmem:[#allocation7 + $0x74] sm:$0xf]
        %v814 = vld [vmem:[#allocation7 + $0x78] sm:$0xf]
        %v815 = vld [vmem:[#allocation7 + $0x7c] sm:$0xf]
        %v832 = vunpack.c.l.b16 %v800
        %v833 = vunpack.c.l.b16 %v801
        %v834 = vunpack.c.l.b16 %v802
        %v835 = vunpack.c.l.b16 %v803
        %v836 = vunpack.c.l.b16 %v804
        %v837 = vunpack.c.l.b16 %v805
        %v838 = vunpack.c.l.b16 %v806
        %v839 = vunpack.c.l.b16 %v807
        %v840 = vunpack.c.l.b16 %v808
        %v841 = vunpack.c.l.b16 %v809
        %v842 = vunpack.c.l.b16 %v810
        %v843 = vunpack.c.l.b16 %v811
        %v844 = vunpack.c.l.b16 %v812
        %v845 = vunpack.c.l.b16 %v813
        %v846 = vunpack.c.l.b16 %v814
        %v847 = vunpack.c.l.b16 %v815
        %v848 = vpack.c.b16 %v833, %v832
        %v849 = vpack.c.b16 %v835, %v834
        %v850 = vpack.c.b16 %v837, %v836
        %v851 = vpack.c.b16 %v839, %v838
        %v852 = vpack.c.b16 %v841, %v840
        %v853 = vpack.c.b16 %v843, %v842
        %v854 = vpack.c.b16 %v845, %v844
        %v855 = vpack.c.b16 %v847, %v846
        %864 = vmatprep.subr.bf16.mxu0 0
        %865 = vmatpush1.bf16.msra.mxu0 %v848
        %866 = vmatprep.subr.bf16.mxu0 0
        %867 = vmatpush1.bf16.msra.mxu0 %v849
        %868 = vmatprep.subr.bf16.mxu0 0
        %869 = vmatpush1.bf16.msra.mxu0 %v850
        %870 = vmatprep.subr.bf16.mxu0 0
        %871 = vmatpush1.bf16.msra.mxu0 %v851
        %872 = vmatprep.subr.bf16.mxu0 0
        %873 = vmatpush1.bf16.msra.mxu0 %v852
        %874 = vmatprep.subr.bf16.mxu0 0
        %875 = vmatpush1.bf16.msra.mxu0 %v853
        %876 = vmatprep.subr.bf16.mxu0 0
        %877 = vmatpush1.bf16.msra.mxu0 %v854
        %878 = vmatprep.subr.bf16.mxu0 0
        %879 = vmatpush1.bf16.msra.mxu0 %v855
        %880 = vmatprep.subr.bf16.mxu0 0
        %881 = vmatpush1.bf16.msra.mxu0 0
        %882 = vmatprep.subr.bf16.mxu0 0
        %883 = vmatpush1.bf16.msra.mxu0 0
        %884 = vmatprep.subr.bf16.mxu0 0
        %885 = vmatpush1.bf16.msra.mxu0 0
        %886 = vmatprep.subr.bf16.mxu0 0
        %887 = vmatpush1.bf16.msra.mxu0 0
        %888 = vmatprep.subr.bf16.mxu0 0
        %889 = vmatpush1.bf16.msra.mxu0 0
        %890 = vmatprep.subr.bf16.mxu0 0
        %891 = vmatpush1.bf16.msra.mxu0 0
        %892 = vmatprep.subr.bf16.mxu0 0
        %893 = vmatpush1.bf16.msra.mxu0 0
        %894 = vmatprep.subr.bf16.mxu0 0
        %895 = vmatpush1.bf16.msra.mxu0 0
        %896 = vmatprep.mubr.bf16.mxu0 0
        %897 = vmatmul.mubr.bf16.gmra.mrb[0].mxu0 %v797
        %v898 = vpop.f32.mrb[0].mxu0
        %v899 = vadd.f32 0.0, %v898
        %v900 = vpop.f32.mrb[0].mxu0
        %v901 = vpop.f32.mrb[0].mxu0
        %v902 = vadd.f32 0.0, %v901
        %v903 = vpop.f32.mrb[0].mxu0
        %904 = vmatprep.mubr.bf16.mxu0 0
        %905 = vmatmul.mubr.bf16.gmra.mrb[0].mxu0 %v798
        %v906 = vpop.f32.mrb[0].mxu0
        %v907 = vadd.f32 0.0, %v906
        %v908 = vpop.f32.mrb[0].mxu0
        %v909 = vpop.f32.mrb[0].mxu0
        %v910 = vadd.f32 0.0, %v909
        %v911 = vpop.f32.mrb[0].mxu0
        %912 = vmatprep.mubr.bf16.mxu0 0
        %913 = vmatmul.mubr.bf16.gmra.mrb[0].mxu0 %v799
        %v914 = vpop.f32.mrb[0].mxu0
        %v915 = vadd.f32 0.0, %v914
        %v916 = vpop.f32.mrb[0].mxu0
        %v917 = vpop.f32.mrb[0].mxu0
        %v918 = vadd.f32 0.0, %v917
        %v919 = vpop.f32.mrb[0].mxu0
        %920 = vdwg.mxu0
        %v937 = vunpack.c.l.b16 %v781
        %v938 = vunpack.c.l.b16 %v782
        %v939 = vunpack.c.l.b16 %v783
        %v940 = vunpack.c.l.b16 %v784
        %v941 = vunpack.c.l.b16 %v785
        %v942 = vunpack.c.l.b16 %v786
        %v943 = vunpack.c.l.b16 %v787
        %v944 = vunpack.c.l.b16 %v788
        %v945 = vunpack.c.l.b16 %v789
        %v946 = vunpack.c.l.b16 %v790
        %v947 = vunpack.c.l.b16 %v791
        %v948 = vunpack.c.l.b16 %v792
        %v949 = vunpack.c.l.b16 %v793
        %v950 = vunpack.c.l.b16 %v794
        %v951 = vunpack.c.l.b16 %v795
        %v952 = vunpack.c.l.b16 %v796
        %v953 = vpack.c.b16 %v938, %v937
        %v954 = vpack.c.b16 %v940, %v939
        %v955 = vpack.c.b16 %v942, %v941
        %v956 = vpack.c.b16 %v944, %v943
        %v957 = vpack.c.b16 %v946, %v945
        %v958 = vpack.c.b16 %v948, %v947
        %v959 = vpack.c.b16 %v950, %v949
        %v960 = vpack.c.b16 %v952, %v951
        %969 = vmatprep.subr.bf16.mxu0 0
        %970 = vmatpush1.bf16.msra.mxu0 %v953
        %971 = vmatprep.subr.bf16.mxu0 0
        %972 = vmatpush1.bf16.msra.mxu0 %v954
        %973 = vmatprep.subr.bf16.mxu0 0
        %974 = vmatpush1.bf16.msra.mxu0 %v955
        %975 = vmatprep.subr.bf16.mxu0 0
        %976 = vmatpush1.bf16.msra.mxu0 %v956
        %977 = vmatprep.subr.bf16.mxu0 0
        %978 = vmatpush1.bf16.msra.mxu0 %v957
        %979 = vmatprep.subr.bf16.mxu0 0
        %980 = vmatpush1.bf16.msra.mxu0 %v958
        %981 = vmatprep.subr.bf16.mxu0 0
        %982 = vmatpush1.bf16.msra.mxu0 %v959
        %983 = vmatprep.subr.bf16.mxu0 0
        %984 = vmatpush1.bf16.msra.mxu0 %v960
        %985 = vmatprep.subr.bf16.mxu0 0
        %986 = vmatpush1.bf16.msra.mxu0 0
        %987 = vmatprep.subr.bf16.mxu0 0
        %988 = vmatpush1.bf16.msra.mxu0 0
        %989 = vmatprep.subr.bf16.mxu0 0
        %990 = vmatpush1.bf16.msra.mxu0 0
        %991 = vmatprep.subr.bf16.mxu0 0
        %992 = vmatpush1.bf16.msra.mxu0 0
        %993 = vmatprep.subr.bf16.mxu0 0
        %994 = vmatpush1.bf16.msra.mxu0 0
        %995 = vmatprep.subr.bf16.mxu0 0
        %996 = vmatpush1.bf16.msra.mxu0 0
        %997 = vmatprep.subr.bf16.mxu0 0
        %998 = vmatpush1.bf16.msra.mxu0 0
        %999 = vmatprep.subr.bf16.mxu0 0
        %1000 = vmatpush1.bf16.msra.mxu0 0
        %1001 = vmatprep.mubr.bf16.mxu0 0
        %1002 = vmatmul.mubr.bf16.gmra.mrb[0].mxu0 %v778
        %v1003 = vpop.f32.mrb[0].mxu0
        %v1004 = vadd.f32 %v899, %v1003
        %v1005 = vpop.f32.mrb[0].mxu0
        %v1006 = vpop.f32.mrb[0].mxu0
        %v1007 = vadd.f32 %v902, %v1006
        %v1008 = vpop.f32.mrb[0].mxu0
        %1009 = vmatprep.mubr.bf16.mxu0 0
        %1010 = vmatmul.mubr.bf16.gmra.mrb[0].mxu0 %v779
        %v1011 = vpop.f32.mrb[0].mxu0
        %v1012 = vadd.f32 %v907, %v1011
        %v1013 = vpop.f32.mrb[0].mxu0
        %v1014 = vpop.f32.mrb[0].mxu0
        %v1015 = vadd.f32 %v910, %v1014
        %v1016 = vpop.f32.mrb[0].mxu0
        %1017 = vmatprep.mubr.bf16.mxu0 0
        %1018 = vmatmul.mubr.bf16.gmra.mrb[0].mxu0 %v780
        %v1019 = vpop.f32.mrb[0].mxu0
        %v1020 = vadd.f32 %v915, %v1019
        %v1021 = vpop.f32.mrb[0].mxu0
        %v1022 = vpop.f32.mrb[0].mxu0
        %v1023 = vadd.f32 %v918, %v1022
        %v1024 = vpop.f32.mrb[0].mxu0
        %1025 = vdwg.mxu0
        %v1026 = vrot.slane %v759, 1
        %v1027 = vrot.slane %v760, 1
        %v1028 = vrot.slane %v761, 1
        %v1029 = vrot.slane %v762, 1
        %v1030 = vrot.slane %v763, 1
        %v1031 = vrot.slane %v764, 1
        %vm1032 = vcmp.lt.s32.totalorder %v467, 7
        %v1033 = vsel %vm1032, %v1030, %v1031
        %v1034 = vsel %vm1032, %v1029, %v1030
        %v1035 = vsel %vm1032, %v1028, %v1029
        %v1036 = vsel %vm1032, %v1027, %v1028
        %v1037 = vsel %vm1032, %v1026, %v1027
        %v1038 = vsel %vm1032, %v1031, %v1026
        %v1039 = vpack.c.bf16 %v1036, %v1037
        %v1040 = vpack.c.bf16 %v1034, %v1035
        %v1041 = vpack.c.bf16 %v1038, %v1033
        %v1042 = vld [vmem:[#allocation7 + $0x80] sm:$0xf]
        %v1043 = vld [vmem:[#allocation7 + $0x84] sm:$0xf]
        %v1044 = vld [vmem:[#allocation7 + $0x88] sm:$0xf]
        %v1045 = vld [vmem:[#allocation7 + $0x8c] sm:$0xf]
        %v1046 = vld [vmem:[#allocation7 + $0x90] sm:$0xf]
        %v1047 = vld [vmem:[#allocation7 + $0x94] sm:$0xf]
        %v1048 = vld [vmem:[#allocation7 + $0x98] sm:$0xf]
        %v1049 = vld [vmem:[#allocation7 + $0x9c] sm:$0xf]
        %v1050 = vld [vmem:[#allocation7 + $0xa0] sm:$0xf]
        %v1051 = vld [vmem:[#allocation7 + $0xa4] sm:$0xf]
        %v1052 = vld [vmem:[#allocation7 + $0xa8] sm:$0xf]
        %v1053 = vld [vmem:[#allocation7 + $0xac] sm:$0xf]
        %v1054 = vld [vmem:[#allocation7 + $0xb0] sm:$0xf]
        %v1055 = vld [vmem:[#allocation7 + $0xb4] sm:$0xf]
        %v1056 = vld [vmem:[#allocation7 + $0xb8] sm:$0xf]
        %v1057 = vld [vmem:[#allocation7 + $0xbc] sm:$0xf]
        %v1074 = vunpack.c.l.b16 %v1042
        %v1075 = vunpack.c.l.b16 %v1043
        %v1076 = vunpack.c.l.b16 %v1044
        %v1077 = vunpack.c.l.b16 %v1045
        %v1078 = vunpack.c.l.b16 %v1046
        %v1079 = vunpack.c.l.b16 %v1047
        %v1080 = vunpack.c.l.b16 %v1048
        %v1081 = vunpack.c.l.b16 %v1049
        %v1082 = vunpack.c.l.b16 %v1050
        %v1083 = vunpack.c.l.b16 %v1051
        %v1084 = vunpack.c.l.b16 %v1052
        %v1085 = vunpack.c.l.b16 %v1053
        %v1086 = vunpack.c.l.b16 %v1054
        %v1087 = vunpack.c.l.b16 %v1055
        %v1088 = vunpack.c.l.b16 %v1056
        %v1089 = vunpack.c.l.b16 %v1057
        %v1090 = vpack.c.b16 %v1075, %v1074
        %v1091 = vpack.c.b16 %v1077, %v1076
        %v1092 = vpack.c.b16 %v1079, %v1078
        %v1093 = vpack.c.b16 %v1081, %v1080
        %v1094 = vpack.c.b16 %v1083, %v1082
        %v1095 = vpack.c.b16 %v1085, %v1084
        %v1096 = vpack.c.b16 %v1087, %v1086
        %v1097 = vpack.c.b16 %v1089, %v1088
        %1106 = vmatprep.subr.bf16.mxu0 0
        %1107 = vmatpush1.bf16.msra.mxu0 %v1090
        %1108 = vmatprep.subr.bf16.mxu0 0
        %1109 = vmatpush1.bf16.msra.mxu0 %v1091
        %1110 = vmatprep.subr.bf16.mxu0 0
        %1111 = vmatpush1.bf16.msra.mxu0 %v1092
        %1112 = vmatprep.subr.bf16.mxu0 0
        %1113 = vmatpush1.bf16.msra.mxu0 %v1093
        %1114 = vmatprep.subr.bf16.mxu0 0
        %1115 = vmatpush1.bf16.msra.mxu0 %v1094
        %1116 = vmatprep.subr.bf16.mxu0 0
        %1117 = vmatpush1.bf16.msra.mxu0 %v1095
        %1118 = vmatprep.subr.bf16.mxu0 0
        %1119 = vmatpush1.bf16.msra.mxu0 %v1096
        %1120 = vmatprep.subr.bf16.mxu0 0
        %1121 = vmatpush1.bf16.msra.mxu0 %v1097
        %1122 = vmatprep.subr.bf16.mxu0 0
        %1123 = vmatpush1.bf16.msra.mxu0 0
        %1124 = vmatprep.subr.bf16.mxu0 0
        %1125 = vmatpush1.bf16.msra.mxu0 0
        %1126 = vmatprep.subr.bf16.mxu0 0
        %1127 = vmatpush1.bf16.msra.mxu0 0
        %1128 = vmatprep.subr.bf16.mxu0 0
        %1129 = vmatpush1.bf16.msra.mxu0 0
        %1130 = vmatprep.subr.bf16.mxu0 0
        %1131 = vmatpush1.bf16.msra.mxu0 0
        %1132 = vmatprep.subr.bf16.mxu0 0
        %1133 = vmatpush1.bf16.msra.mxu0 0
        %1134 = vmatprep.subr.bf16.mxu0 0
        %1135 = vmatpush1.bf16.msra.mxu0 0
        %1136 = vmatprep.subr.bf16.mxu0 0
        %1137 = vmatpush1.bf16.msra.mxu0 0
        %1138 = vmatprep.mubr.bf16.mxu0 0
        %1139 = vmatmul.mubr.bf16.gmra.mrb[0].mxu0 %v1039
        %v1140 = vpop.f32.mrb[0].mxu0
        %v1141 = vadd.f32 0.0, %v1140
        %v1142 = vpop.f32.mrb[0].mxu0
        %v1143 = vpop.f32.mrb[0].mxu0
        %v1144 = vadd.f32 0.0, %v1143
        %v1145 = vpop.f32.mrb[0].mxu0
        %1146 = vmatprep.mubr.bf16.mxu0 0
        %1147 = vmatmul.mubr.bf16.gmra.mrb[0].mxu0 %v1040
        %v1148 = vpop.f32.mrb[0].mxu0
        %v1149 = vadd.f32 0.0, %v1148
        %v1150 = vpop.f32.mrb[0].mxu0
        %v1151 = vpop.f32.mrb[0].mxu0
        %v1152 = vadd.f32 0.0, %v1151
        %v1153 = vpop.f32.mrb[0].mxu0
        %1154 = vmatprep.mubr.bf16.mxu0 0
        %1155 = vmatmul.mubr.bf16.gmra.mrb[0].mxu0 %v1041
        %v1156 = vpop.f32.mrb[0].mxu0
        %v1157 = vadd.f32 0.0, %v1156
        %v1158 = vpop.f32.mrb[0].mxu0
        %v1159 = vpop.f32.mrb[0].mxu0
        %v1160 = vadd.f32 0.0, %v1159
        %v1161 = vpop.f32.mrb[0].mxu0
        %1162 = vdwg.mxu0
        %v1163 = vadd.f32 %v1004, %v1141
        %v1164 = vadd.f32 %v1007, %v1144
        %v1165 = vadd.f32 %v1012, %v1149
        %v1166 = vadd.f32 %v1015, %v1152
        %v1167 = vadd.f32 %v1020, %v1157
        %v1168 = vadd.f32 %v1023, %v1160
        %v1169 = vld [vmem:[%s4] sm:$0x1]
        %v1171 = vlaneseq
        %v1172 = vshrl.u32 %v1171, 7
        %v1173 = vsub.s32 0, %v1172
        %v1174 = vrot.slane %v1169, %v1173
        %v1176 = vadd.f32 %v1163, %v1174
        %v1177 = vadd.f32 %v1164, %v1174
        %v1178 = vadd.f32 %v1165, %v1174
        %v1179 = vadd.f32 %v1166, %v1174
        %v1180 = vadd.f32 %v1167, %v1174
        %v1181 = vadd.f32 %v1168, %v1174
        %v1182 = vmul.f32 %v1176, %v1176
        %v1183 = vmul.f32 %v1177, %v1177
        %v1184 = vmul.f32 %v1178, %v1178
        %v1185 = vmul.f32 %v1179, %v1179
        %v1186 = vmul.f32 %v1180, %v1180
        %v1187 = vmul.f32 %v1181, %v1181
        %1188 = vadd.xlane.f32.xlu0 %v1182
        %v1189 = vpop.xlane.xlu0 %1188
        %1190 = vadd.xlane.f32.xlu0 %v1183
        %v1191 = vpop.xlane.xlu0 %1190
        %1192 = vadd.xlane.f32.xlu0 %v1184
        %v1193 = vpop.xlane.xlu0 %1192
        %1194 = vadd.xlane.f32.xlu0 %v1185
        %v1195 = vpop.xlane.xlu0 %1194
        %1196 = vadd.xlane.f32.xlu0 %v1186
        %v1197 = vpop.xlane.xlu0 %1196
        %1198 = vadd.xlane.f32.xlu0 %v1187
        %v1199 = vpop.xlane.xlu0 %1198
        %v1200 = vmul.f32 %v1189, 0.0625
        %v1201 = vmul.f32 %v1191, 0.0625
        %v1202 = vmul.f32 %v1193, 0.0625
        %v1203 = vmul.f32 %v1195, 0.0625
        %v1204 = vmul.f32 %v1197, 0.0625
        %v1205 = vmul.f32 %v1199, 0.0625
        %v1206 = vadd.f32 %v1200, 1.1920929e-07
        %v1207 = vadd.f32 %v1201, 1.1920929e-07
        %v1208 = vadd.f32 %v1202, 1.1920929e-07
        %v1209 = vadd.f32 %v1203, 1.1920929e-07
        %v1210 = vadd.f32 %v1204, 1.1920929e-07
        %v1211 = vadd.f32 %v1205, 1.1920929e-07
        %v1212 = vrsqrt.pop %v1206
        %v1213 = vrsqrt.pop %v1207
        %v1214 = vrsqrt.pop %v1208
        %v1215 = vrsqrt.pop %v1209
        %v1216 = vrsqrt.pop %v1210
        %v1217 = vrsqrt.pop %v1211
        %v1218 = vmul.f32 %v1176, %v1212
        %v1219 = vmul.f32 %v1177, %v1213
        %v1220 = vmul.f32 %v1178, %v1214
        %v1221 = vmul.f32 %v1179, %v1215
        %v1222 = vmul.f32 %v1180, %v1216
        %v1223 = vmul.f32 %v1181, %v1217
        %v1224 = vld [vmem:[%s6] sm:$0x1]
        %v1226 = vlaneseq
        %v1227 = vshrl.u32 %v1226, 7
        %v1228 = vsub.s32 0, %v1227
        %v1229 = vrot.slane %v1224, %v1228
        %v1231 = vmul.f32 %v1218, %v1229
        %v1232 = vmul.f32 %v1219, %v1229
        %v1233 = vmul.f32 %v1220, %v1229
        %v1234 = vmul.f32 %v1221, %v1229
        %v1235 = vmul.f32 %v1222, %v1229
        %v1236 = vmul.f32 %v1223, %v1229
        %v1237 = vmul.f32 %v1231, %v497
        %v1238 = vmul.f32 %v1232, %v498
        %v1239 = vmul.f32 %v1233, %v499
        %v1240 = vmul.f32 %v1234, %v500
        %v1241 = vmul.f32 %v1235, %v501
        %v1242 = vmul.f32 %v1236, %v502
        %v1243 = vadd.f32 %v1237, %v1238
        %v1244 = vadd.f32 %v1243, %v1239
        %v1245 = vadd.f32 %v1244, %v1240
        %v1246 = vadd.f32 %v1245, %v1241
        %v1247 = vadd.f32 %v1246, %v1242
        %v1248 = vrot.slane %v1247, 4
        %v1249 = vadd.f32 %v1247, %v1248
        %v1250 = vrot.slane %v1249, 2
        %v1251 = vadd.f32 %v1249, %v1250
        %v1252 = vrot.slane %v1251, 1
        %v1253 = vadd.f32 %v1251, %v1252
        %v1254 = vmul.f32 %v1253, 0.03125
        %v1255 = vld [vmem:[#allocation8] sm:$0xff]
        %v1256 = vld [vmem:[#allocation8 + $0x8] sm:$0xff]
        %v1257 = vld [vmem:[#allocation8 + $0x10] sm:$0xff]
        %v1258 = vld [vmem:[#allocation8 + $0x18] sm:$0xff]
        %v1259 = vld [vmem:[#allocation8 + $0x20] sm:$0xff]
        %v1260 = vld [vmem:[#allocation8 + $0x28] sm:$0xff]
        %v1261 = vld [vmem:[#allocation8 + $0x30] sm:$0xff]
        %v1262 = vld [vmem:[#allocation8 + $0x38] sm:$0xff]
        %v1263 = vld [vmem:[#allocation8 + $0x40] sm:$0xff]
        %v1264 = vld [vmem:[#allocation8 + $0x48] sm:$0xff]
        %v1265 = vld [vmem:[#allocation8 + $0x50] sm:$0xff]
        %v1266 = vld [vmem:[#allocation8 + $0x58] sm:$0xff]
        %v1267 = vld [vmem:[#allocation8 + $0x60] sm:$0xff]
        %v1268 = vld [vmem:[#allocation8 + $0x68] sm:$0xff]
        %v1269 = vld [vmem:[#allocation8 + $0x70] sm:$0xff]
        %v1270 = vld [vmem:[#allocation8 + $0x78] sm:$0xff]
        %v1271 = vld [vmem:[%s8] sm:$0x1]
        %1272 = vmatprep.subr.mxu0 0.0
        %1273 = vmatpush1.msra.mxu0 %v1255
        %1274 = vmatprep.subr.mxu0 0.0
        %1275 = vmatpush1.msra.mxu0 %v1256
        %1276 = vmatprep.subr.mxu0 0.0
        %1277 = vmatpush1.msra.mxu0 %v1257
        %1278 = vmatprep.subr.mxu0 0.0
        %1279 = vmatpush1.msra.mxu0 %v1258
        %1280 = vmatprep.subr.mxu0 0.0
        %1281 = vmatpush1.msra.mxu0 %v1259
        %1282 = vmatprep.subr.mxu0 0.0
        %1283 = vmatpush1.msra.mxu0 %v1260
        %1284 = vmatprep.subr.mxu0 0.0
        %1285 = vmatpush1.msra.mxu0 %v1261
        %1286 = vmatprep.subr.mxu0 0.0
        %1287 = vmatpush1.msra.mxu0 %v1262
        %1288 = vmatprep.subr.mxu0 0.0
        %1289 = vmatpush1.msra.mxu0 %v1263
        %1290 = vmatprep.subr.mxu0 0.0
        %1291 = vmatpush1.msra.mxu0 %v1264
        %1292 = vmatprep.subr.mxu0 0.0
        %1293 = vmatpush1.msra.mxu0 %v1265
        %1294 = vmatprep.subr.mxu0 0.0
        %1295 = vmatpush1.msra.mxu0 %v1266
        %1296 = vmatprep.subr.mxu0 0.0
        %1297 = vmatpush1.msra.mxu0 %v1267
        %1298 = vmatprep.subr.mxu0 0.0
        %1299 = vmatpush1.msra.mxu0 %v1268
        %1300 = vmatprep.subr.mxu0 0.0
        %1301 = vmatpush1.msra.mxu0 %v1269
        %1302 = vmatprep.subr.mxu0 0.0
        %1303 = vmatpush1.msra.mxu0 %v1270
        %1304 = vmatprep.subr.mxu0 0.0
        %1305 = vmatpush1.msra.mxu0 0.0
        %1306 = vmatprep.subr.mxu0 0.0
        %1307 = vmatpush1.msra.mxu0 0.0
        %1308 = vmatprep.subr.mxu0 0.0
        %1309 = vmatpush1.msra.mxu0 0.0
        %1310 = vmatprep.subr.mxu0 0.0
        %1311 = vmatpush1.msra.mxu0 0.0
        %1312 = vmatprep.subr.mxu0 0.0
        %1313 = vmatpush1.msra.mxu0 0.0
        %1314 = vmatprep.subr.mxu0 0.0
        %1315 = vmatpush1.msra.mxu0 0.0
        %1316 = vmatprep.subr.mxu0 0.0
        %1317 = vmatpush1.msra.mxu0 0.0
        %1318 = vmatprep.subr.mxu0 0.0
        %1319 = vmatpush1.msra.mxu0 0.0
        %1320 = vmatprep.subr.mxu0 0.0
        %1321 = vmatpush1.msra.mxu0 0.0
        %1322 = vmatprep.subr.mxu0 0.0
        %1323 = vmatpush1.msra.mxu0 0.0
        %1324 = vmatprep.subr.mxu0 0.0
        %1325 = vmatpush1.msra.mxu0 0.0
        %1326 = vmatprep.subr.mxu0 0.0
        %1327 = vmatpush1.msra.mxu0 0.0
        %1328 = vmatprep.subr.mxu0 0.0
        %1329 = vmatpush1.msra.mxu0 0.0
        %1330 = vmatprep.subr.mxu0 0.0
        %1331 = vmatpush1.msra.mxu0 0.0
        %1332 = vmatprep.subr.mxu0 0.0
        %1333 = vmatpush1.msra.mxu0 0.0
        %1334 = vmatprep.subr.mxu0 0.0
        %1335 = vmatpush1.msra.mxu0 0.0
        %1336 = vmatprep.mubr.f32.mxu0 0.0
        %1337 = vmatmul.mubr.f32.gmra.mrb[0].mxu0 %v1254
        %v1338 = vpop.f32.mrb[0].mxu0
        %v1339 = vadd.f32 %v1271, %v1338
        %v1340 = vpop.f32.mrb[0].mxu0
        %1341 = vdwg.mxu0
        %v1342 = vmax.f32 %v1339, 0.0
        %v1343 = vld [vmem:[#allocation10] sm:$0xff]
        %v1344 = vld [vmem:[#allocation10 + $0x8] sm:$0xff]
        %v1345 = vld [vmem:[#allocation10 + $0x10] sm:$0xff]
        %v1346 = vld [vmem:[#allocation10 + $0x18] sm:$0xff]
        %v1347 = vld [vmem:[#allocation10 + $0x20] sm:$0xff]
        %v1348 = vld [vmem:[#allocation10 + $0x28] sm:$0xff]
        %v1349 = vld [vmem:[#allocation10 + $0x30] sm:$0xff]
        %v1350 = vld [vmem:[#allocation10 + $0x38] sm:$0xff]
        %v1351 = vld [vmem:[#allocation10 + $0x40] sm:$0xff]
        %v1352 = vld [vmem:[#allocation10 + $0x48] sm:$0xff]
        %v1353 = vld [vmem:[#allocation10 + $0x50] sm:$0xff]
        %v1354 = vld [vmem:[#allocation10 + $0x58] sm:$0xff]
        %v1355 = vld [vmem:[#allocation10 + $0x60] sm:$0xff]
        %v1356 = vld [vmem:[#allocation10 + $0x68] sm:$0xff]
        %v1357 = vld [vmem:[#allocation10 + $0x70] sm:$0xff]
        %v1358 = vld [vmem:[#allocation10 + $0x78] sm:$0xff]
        %v1359 = vld [vmem:[%s10] sm:$0x1]
        %1360 = vmatprep.subr.mxu0 0.0
        %1361 = vmatpush1.msra.mxu0 %v1343
        %1362 = vmatprep.subr.mxu0 0.0
        %1363 = vmatpush1.msra.mxu0 %v1344
        %1364 = vmatprep.subr.mxu0 0.0
        %1365 = vmatpush1.msra.mxu0 %v1345
        %1366 = vmatprep.subr.mxu0 0.0
        %1367 = vmatpush1.msra.mxu0 %v1346
        %1368 = vmatprep.subr.mxu0 0.0
        %1369 = vmatpush1.msra.mxu0 %v1347
        %1370 = vmatprep.subr.mxu0 0.0
        %1371 = vmatpush1.msra.mxu0 %v1348
        %1372 = vmatprep.subr.mxu0 0.0
        %1373 = vmatpush1.msra.mxu0 %v1349
        %1374 = vmatprep.subr.mxu0 0.0
        %1375 = vmatpush1.msra.mxu0 %v1350
        %1376 = vmatprep.subr.mxu0 0.0
        %1377 = vmatpush1.msra.mxu0 %v1351
        %1378 = vmatprep.subr.mxu0 0.0
        %1379 = vmatpush1.msra.mxu0 %v1352
        %1380 = vmatprep.subr.mxu0 0.0
        %1381 = vmatpush1.msra.mxu0 %v1353
        %1382 = vmatprep.subr.mxu0 0.0
        %1383 = vmatpush1.msra.mxu0 %v1354
        %1384 = vmatprep.subr.mxu0 0.0
        %1385 = vmatpush1.msra.mxu0 %v1355
        %1386 = vmatprep.subr.mxu0 0.0
        %1387 = vmatpush1.msra.mxu0 %v1356
        %1388 = vmatprep.subr.mxu0 0.0
        %1389 = vmatpush1.msra.mxu0 %v1357
        %1390 = vmatprep.subr.mxu0 0.0
        %1391 = vmatpush1.msra.mxu0 %v1358
        %1392 = vmatprep.subr.mxu0 0.0
        %1393 = vmatpush1.msra.mxu0 0.0
        %1394 = vmatprep.subr.mxu0 0.0
        %1395 = vmatpush1.msra.mxu0 0.0
        %1396 = vmatprep.subr.mxu0 0.0
        %1397 = vmatpush1.msra.mxu0 0.0
        %1398 = vmatprep.subr.mxu0 0.0
        %1399 = vmatpush1.msra.mxu0 0.0
        %1400 = vmatprep.subr.mxu0 0.0
        %1401 = vmatpush1.msra.mxu0 0.0
        %1402 = vmatprep.subr.mxu0 0.0
        %1403 = vmatpush1.msra.mxu0 0.0
        %1404 = vmatprep.subr.mxu0 0.0
        %1405 = vmatpush1.msra.mxu0 0.0
        %1406 = vmatprep.subr.mxu0 0.0
        %1407 = vmatpush1.msra.mxu0 0.0
        %1408 = vmatprep.subr.mxu0 0.0
        %1409 = vmatpush1.msra.mxu0 0.0
        %1410 = vmatprep.subr.mxu0 0.0
        %1411 = vmatpush1.msra.mxu0 0.0
        %1412 = vmatprep.subr.mxu0 0.0
        %1413 = vmatpush1.msra.mxu0 0.0
        %1414 = vmatprep.subr.mxu0 0.0
        %1415 = vmatpush1.msra.mxu0 0.0
        %1416 = vmatprep.subr.mxu0 0.0
        %1417 = vmatpush1.msra.mxu0 0.0
        %1418 = vmatprep.subr.mxu0 0.0
        %1419 = vmatpush1.msra.mxu0 0.0
        %1420 = vmatprep.subr.mxu0 0.0
        %1421 = vmatpush1.msra.mxu0 0.0
        %1422 = vmatprep.subr.mxu0 0.0
        %1423 = vmatpush1.msra.mxu0 0.0
        %1424 = vmatprep.mubr.f32.mxu0 0.0
        %1425 = vmatmul.mubr.f32.gmra.mrb[0].mxu0 %v1342
        %v1426 = vpop.f32.mrb[0].mxu0
        %v1427 = vadd.f32 %v1359, %v1426
        %v1428 = vpop.f32.mrb[0].mxu0
        %1429 = vdwg.mxu0
        %v1430 = vxor.u32 %v1427, 2147483648
        %v1431 = vmul.f32 %v1430, 1.442695
        %v1432 = vpow.pop %v1431
        %v1433 = vadd.f32 %v1432, 1.0
        %v1434 = vrcp.pop %v1433
        %v1435 = vmul.f32 1.0, %v1434
        %v1436 = vlaneseq
        %v1437 = vshrl.u32 %v1436, 7
        %v1438 = vsub.s32 0, %v1437
        %v1439 = vrot.slane %v1435, %v1438
        %v1440 = vmul.f32 %v1231, %v1439
        %v1441 = vmul.f32 %v1232, %v1439
        %v1442 = vmul.f32 %v1233, %v1439
        %v1443 = vmul.f32 %v1234, %v1439
        %v1444 = vmul.f32 %v1235, %v1439
        %v1445 = vmul.f32 %v1236, %v1439
        %v1446 = vadd.f32 %v1440, %v672
        %v1447 = vadd.f32 %v1441, %v676
        %v1448 = vadd.f32 %v1442, %v682
        %v1449 = vadd.f32 %v1443, %v686
        %v1450 = vadd.f32 %v1444, %v692
        %v1451 = vadd.f32 %v1445, %v696
        %v1452 = vmax.f32 %v1446, 0.0
        %v1453 = vmax.f32 %v1447, 0.0
        %v1454 = vmax.f32 %v1448, 0.0
        %v1455 = vmax.f32 %v1449, 0.0
        %v1456 = vmax.f32 %v1450, 0.0
        %v1457 = vmax.f32 %v1451, 0.0
        %v1458 = vmul.f32 %v1452, %v497
        %v1459 = vmul.f32 %v1453, %v498
        %v1460 = vmul.f32 %v1454, %v499
        %v1461 = vmul.f32 %v1455, %v500
        %v1462 = vmul.f32 %v1456, %v501
        %v1463 = vmul.f32 %v1457, %v502
        %1464 = vst [vmem:[%s462] sm:$0xff] %v1458
        %1465 = vst [vmem:[%s462 + $0x8] sm:$0xff] %v1459
        %1466 = vst [vmem:[%s462 + $0x10] sm:$0xff] %v1460
        %1467 = vst [vmem:[%s462 + $0x18] sm:$0xff] %v1461
        %1468 = vst [vmem:[%s462 + $0x20] sm:$0xff] %v1462
        %1469 = vst [vmem:[%s462 + $0x28] sm:$0xff] %v1463
        %s1470 = sand.u32 %s274, 1
        %s1471 = scalar_lea.sflag [#allocation4], %s1470
        %s1472 = sand.u32 %s274, 1
        %s1473 = smul.addr %s1472, 48
        %s1474 = scalar_lea.vmem [#allocation11], %s1473
        // Predicated region
        $region85: #{tpu_custom_call.1} parent=63 // pred_check
          %p1475 = pneg %p284
        $region86: #{tpu_custom_call.1} parent=63 // pred_check_branch
          %1477 = sbr.rel (%p1475) target = $region88
        $region87: #{tpu_custom_call.1} parent=63 // pred_region
          %s1478 = smul.u32 6, %s30
          %s1480 = ssub.s32 768, 768
          %1481 = vsyncadd %s1471, %s1480
          %s1482 = smul.addr %s1478, 128
          %s1483 = scalar_lea.hbm %s11, %s1482
          %s1484 = sshll.u32 %s1474, 4
          %s1485 = int_to_ptr.vmem [resolvable:$true] %s1484
          %1490 = dma.vmem_to_hbm [thread:$0]  %s1485, 768, %s1483, %s1471, 128, 128, 8
        $region88: #{tpu_custom_call.1} parent=63 // pred_fallthru
          _
      $region64: #{tpu_custom_call.1} parent=5 // pred_fallthru
        _
      %p1491 = scmp.le.s32.totalorder 2, %s25
      // Predicated region
      $region89: #{tpu_custom_call.1} parent=5 // pred_check
        %p1492 = pneg %p1491
      $region90: #{tpu_custom_call.1} parent=5 // pred_check_branch
        %1494 = sbr.rel (%p1492) target = $region92
      $region91: #{tpu_custom_call.1} parent=5 // pred_region
        %s1495 = ssub.s32 %s25, 2
        // Predicated region
        $region93: #{tpu_custom_call.1} parent=91 // pred_check
          %p1496 = pneg %p290
        $region94: #{tpu_custom_call.1} parent=91 // pred_check_branch
          %1498 = sbr.rel (%p1496) target = $region96
        $region95: #{tpu_custom_call.1} parent=91 // pred_region
          %s1499 = sand.u32 %s275, 1
          %s1500 = scalar_lea.sflag [#allocation4], %s1499
          %s1501 = sand.u32 %s275, 1
          %s1502 = smul.addr %s1501, 48
          %s1503 = scalar_lea.vmem [#allocation11], %s1502
          %1504 = dma.done %s1500, 768
        $region96: #{tpu_custom_call.1} parent=91 // pred_fallthru
          _
      $region92: #{tpu_custom_call.1} parent=5 // pred_fallthru
        _
    $region6: #{tpu_custom_call.1} parent=1 // loop_footer
      %s29 = sadd.s32 1, %s25
    $region7: #{tpu_custom_call.1} parent=1 // loop_footer_branch
      %24 = sbr.rel target = $region3
    $region8: #{tpu_custom_call.1} parent=1 // loop_exit
      _
    %1505 = vsyncpa [#allocation3], 1
    %s1506 = scalar_lea.sflag [#allocation3], 1
    %1507 = vsyncpa %s1506, 1
    %1508 = vsyncpa [#allocation6], 1
    %1509 = vsyncpa [#allocation9], 1
    %1510 = vsyncpa [#allocation4], 1
    %s1511 = scalar_lea.sflag [#allocation4], 1
    %1512 = vsyncpa %s1511, 1

</llo_original>
